<compile_context>
chip_gen: v5e
topology: v5e:2x2
jax: 0.10.0
libtpu: 0.0.40
codegen_flags: <defaults>
</compile_context>

<pallas_src>
import functools

import jax
import jax.numpy as jnp
from jax.experimental import pallas as pl
from jax.experimental.pallas import tpu as pltpu

EPS = 1e-6  # matches partial(nn.LayerNorm, eps=1e-6)


# ----------------------------- in-kernel helpers -----------------------------

def _layernorm(x, w, b):
    mean = jnp.mean(x, axis=-1, keepdims=True)
    var = jnp.mean(jnp.square(x - mean), axis=-1, keepdims=True)
    return (x - mean) * jax.lax.rsqrt(var + EPS) * w + b


def _gelu(x):
    # exact (erf-based) GELU, like nn.GELU(approximate='none')
    return 0.5 * x * (1.0 + jax.lax.erf(x * jnp.float32(0.7071067811865476)))


# --------------------------------- kernel ------------------------------------

def encoder_kernel(x_ref, dvec_ref, bqkv_ref, b1_ref,
                   wqkv_ref, wout_ref, w1_ref, w2_ref, lnf_ref,
                   o_ref, carry, *, num_heads):
    l = pl.program_id(1)
    last = pl.num_programs(1) - 1
    bf16 = jnp.bfloat16

    TB, S, D = x_ref.shape
    H = num_heads
    dh = D // H
    N = TB * S

    # ---- initialize the residual carry on the first layer step ---------------
    # (pos embedding already added host-side)
    @pl.when(l == 0)
    def _():
        carry[...] = x_ref[...].reshape(N, D).astype(jnp.float32)

    x = carry[...]                                   # (TB*S, D) f32 residual stream

    # ---- unpack the packed per-layer vectors ----------------------------------
    dv = dvec_ref[0]                                 # (6, D): ln1w ln1b bout ln2w ln2b b2
    ln1w, ln1b = dv[0:1], dv[1:2]
    bout = dv[2:3]
    ln2w, ln2b = dv[3:4], dv[4:5]
    b2 = dv[5:6]
    bqkv = bqkv_ref[0]                               # (1, 3D)
    b1 = b1_ref[0]                                   # (1, M)

    # ---- LN1 + QKV projection over the whole batch tile (weight reuse) --------
    # NB: 1/sqrt(dh) is pre-folded into the q columns of Wqkv / bqkv on the host.
    xn = _layernorm(x, ln1w, ln1b)
    qkv = jnp.dot(xn.astype(bf16), wqkv_ref[0],
                  preferred_element_type=jnp.float32) + bqkv          # (TB*S, 3D)

    # ---- multi-head self-attention core ---------------------------------------
    # Heads batched on the leading einsum axis (guaranteed-lowerable form);
    # small unrolled loop over the TB batch-tile elements so softmax never
    # mixes tokens across batch elements.
    attn_rows = []
    for b in range(TB):
        blk = qkv[b * S:(b + 1) * S]                                   # (S, 3D)
        qh = jnp.swapaxes(blk[:, :D].reshape(S, H, dh), 0, 1).astype(bf16)       # (H,S,dh)
        kh = jnp.swapaxes(blk[:, D:2 * D].reshape(S, H, dh), 0, 1).astype(bf16)  # (H,S,dh)
        vh = jnp.swapaxes(blk[:, 2 * D:].reshape(S, H, dh), 0, 1).astype(bf16)   # (H,S,dh)

        s = jnp.einsum('hqd,hkd->hqk', qh, kh,
                       preferred_element_type=jnp.float32)             # (H,S,S)
        s = s - jnp.max(s, axis=-1, keepdims=True)
        p = jnp.exp(s)
        p = p / jnp.sum(p, axis=-1, keepdims=True)   # exact softmax (PyTorch parity)
        oh = jnp.einsum('hqk,hkd->hqd', p.astype(bf16), vh,
                        preferred_element_type=jnp.float32)            # (H,S,dh)
        attn_rows.append(jnp.swapaxes(oh, 0, 1).reshape(S, D))         # lane-dense

    attn = attn_rows[0] if TB == 1 else jnp.concatenate(attn_rows, axis=0)  # (TB*S, D)

    attn = jnp.dot(attn.astype(bf16), wout_ref[0],
                   preferred_element_type=jnp.float32) + bout

    x1 = x + attn                                    # residual 1 (dropout = id)

    # ---- LN2 + MLP (Linear -> GELU -> Linear), fused over the batch tile -------
    yn = _layernorm(x1, ln2w, ln2b)
    h1 = _gelu(jnp.dot(yn.astype(bf16), w1_ref[0],
                       preferred_element_type=jnp.float32) + b1)
    h2 = jnp.dot(h1.astype(bf16), w2_ref[0],
                 preferred_element_type=jnp.float32) + b2

    out = x1 + h2                                    # residual 2
    carry[...] = out

    # ---- fused final LayerNorm on the last layer step ---------------------------
    @pl.when(l == last)
    def _():
        lnf = lnf_ref[...]                           # (2, D): [weight; bias]
        o_ref[...] = _layernorm(out, lnf[0:1], lnf[1:2]) \
            .reshape(TB, S, D).astype(o_ref.dtype)


# --------------------------------- wrapper -----------------------------------

def _pick_batch_tile(B):
    """TB in {4, 2} for weight-DMA amortization, preferring >= 2 remaining
    'parallel' grid steps (keeps both v7x TensorCores busy); else any divisor."""
    for tb in (4, 2):
        if B % tb == 0 and B // tb >= 2:
            return tb
    for tb in (4, 2):
        if B % tb == 0:
            return tb
    return 1


def _vmem_limit_bytes():
    """~85% of physical VMEM: ~54 MiB/TC on v7x (64 MiB phys, headroom for
    Mosaic scratch/semaphores), ~108 MiB on v5e/v6e (128 MiB phys)."""
    default = 64 * 1024 * 1024
    try:
        cap = getattr(pltpu.get_tpu_info(), "vmem_capacity_bytes", None)
    except Exception:
        cap = None
    return int(0.85 * cap) if cap else default


def encoder_forward(x, ep, num_heads, *, batch_tile=None):
    B, S, D = x.shape
    L = ep["wqkv"].shape[0]
    M = ep["w1"].shape[-1]

    TB = batch_tile or _pick_batch_tile(B)
    assert B % TB == 0, f"batch {B} must be divisible by batch tile {TB}"
    nb = B // TB

    # Fold "x + pos_embedding" into the host wrapper: one cheap XLA add, drops a
    # per-grid-step (S, D) input stream and the layer-0 special case in-kernel.
    x = x + ep["pos"]

    def xmap(b, l):    # activation / output block: per batch tile, constant over L
        return (b, 0, 0)

    def lmap(b, l):    # per-layer stacked weights: indexed by layer
        return (l, 0, 0)

    in_specs = [
        pl.BlockSpec((TB, S, D), xmap),                    # x (+pos), f32
        pl.BlockSpec((1, 6, D), lmap),                     # packed [ln1w,ln1b,bout,ln2w,ln2b,b2]
        pl.BlockSpec((1, 1, 3 * D), lmap),                 # bqkv
        pl.BlockSpec((1, 1, M), lmap),                     # b1
        pl.BlockSpec((1, D, 3 * D), lmap),                 # Wqkv^T  (bf16)
        pl.BlockSpec((1, D, D), lmap),                     # Wout^T  (bf16)
        pl.BlockSpec((1, D, M), lmap),                     # W1^T    (bf16)
        pl.BlockSpec((1, M, D), lmap),                     # W2^T    (bf16)
        pl.BlockSpec((2, D), lambda b, l: (0, 0)),         # final LN [weight; bias]
    ]

    return pl.pallas_call(
        functools.partial(encoder_kernel, num_heads=num_heads),
        out_shape=jax.ShapeDtypeStruct((B, S, D), x.dtype),
        grid=(nb, L),
        in_specs=in_specs,
        out_specs=pl.BlockSpec((TB, S, D), xmap),
        scratch_shapes=[pltpu.VMEM((TB * S, D), jnp.float32)],  # residual-stream carry
        compiler_params=pltpu.CompilerParams(
            dimension_semantics=("parallel", "arbitrary"),
            vmem_limit_bytes=_vmem_limit_bytes()),
    )(x, ep["dvec"], ep["bqkv"], ep["b1"],
      ep["wqkv"], ep["wout"], ep["w1"], ep["w2"], ep["lnf"])


# ----------------------------- parameter init --------------------------------

def _xavier(key, shape):
    fan_out, fan_in = shape
    lim = (6.0 / (fan_in + fan_out)) ** 0.5
    return jax.random.uniform(key, shape, jnp.float32, -lim, lim)


def init_torch_style_params(key, num_layers, seq, D, M):
    """PyTorch-layout parameters (weights are (out_features, in_features))."""
    keys = jax.random.split(key, 1 + num_layers)
    pos = 0.02 * jax.random.normal(keys[0], (1, seq, D), jnp.float32)
    layers = []
    for i in range(num_layers):
        ks = jax.random.split(keys[1 + i], 6)
        layers.append(dict(
            ln1w=jnp.ones((D,), jnp.float32), ln1b=jnp.zeros((D,), jnp.float32),
            wqkv=_xavier(ks[0], (3 * D, D)),  bqkv=jnp.zeros((3 * D,), jnp.float32),
            wout=_xavier(ks[1], (D, D)),      bout=jnp.zeros((D,), jnp.float32),
            ln2w=jnp.ones((D,), jnp.float32), ln2b=jnp.zeros((D,), jnp.float32),
            w1=_xavier(ks[2], (M, D)),
            b1=1e-6 * jax.random.normal(ks[3], (M,), jnp.float32),
            w2=_xavier(ks[4], (D, M)),
            b2=1e-6 * jax.random.normal(ks[5], (D,), jnp.float32),
        ))
    lnw = jnp.ones((D,), jnp.float32)
    lnb = jnp.zeros((D,), jnp.float32)
    return pos, layers, lnw, lnb


def prepare_params(pos, layers, lnw, lnb, num_heads):
    """Host-side prep: stack per-layer params on a leading L axis, pre-transpose
    matmul weights to (in, out), fold 1/sqrt(dh) into the q projection, cast
    matmul weights to bf16, and pack the small per-layer vectors into a single
    (L, 6, D) array (fewer DMA streams per grid step)."""
    D = layers[0]["wout"].shape[0]
    dh = D // num_heads
    scale = 1.0 / (dh ** 0.5)

    def stack(fn):
        return jnp.stack([fn(p) for p in layers], axis=0)

    wqkv_t = stack(lambda p: p["wqkv"].T)                 # (L, D, 3D) f32
    bqkv = stack(lambda p: p["bqkv"][None, :])            # (L, 1, 3D)
    # Exact, free: scale the q output columns instead of scaling q in-kernel.
    q_scale = jnp.concatenate([jnp.full((D,), scale, jnp.float32),
                               jnp.ones((2 * D,), jnp.float32)])
    wqkv_t = wqkv_t * q_scale[None, None, :]
    bqkv = bqkv * q_scale[None, None, :]

    # packed per-layer D-width vectors: [ln1w, ln1b, bout, ln2w, ln2b, b2]
    dvec = stack(lambda p: jnp.stack(
        [p["ln1w"], p["ln1b"], p["bout"], p["ln2w"], p["ln2b"], p["b2"]], axis=0))

    return dict(
        pos=pos,                                                        # (1, S, D)
        dvec=dvec,                                                      # (L, 6, D)
        bqkv=bqkv,                                                      # (L, 1, 3D)
        b1=stack(lambda p: p["b1"][None, :]),                           # (L, 1, M)
        wqkv=wqkv_t.astype(jnp.bfloat16),                               # (L, D, 3D)
        wout=stack(lambda p: p["wout"].T).astype(jnp.bfloat16),         # (L, D, D)
        w1=stack(lambda p: p["w1"].T).astype(jnp.bfloat16),             # (L, D, M)
        w2=stack(lambda p: p["w2"].T).astype(jnp.bfloat16),             # (L, M, D)
        lnf=jnp.stack([lnw, lnb], axis=0),                              # (2, D)
    )


# ----------------------------------- main -------------------------------------

if __name__ == "__main__":
    # batch, seq, hidden, heads, mlp_dim, layers (small shapes; batch=4 so the
    # batch-tiled path TB=2 with 2 parallel grid steps is exercised)
    B, S, D, H, M, L = 4, 8, 32, 4, 64, 2
    key = jax.random.PRNGKey(0)
    kx, kp = jax.random.split(key)
    x = jax.random.normal(kx, (B, S, D), jnp.float32)

    pos, layers, lnw, lnb = init_torch_style_params(kp, L, S, D, M)
    params = prepare_params(pos, layers, lnw, lnb, H)

    out = encoder_forward(x, params, H)
    jax.block_until_ready(out)
    assert out.shape == (B, S, D) and out.dtype == jnp.float32
    print("KERNEL_OK")
</pallas_src>

<mosaic_0001>
module attributes {stable_mosaic.version = 11 : i64} {
  func.func @encoder_kernel(%arg0: i32, %arg1: i32, %arg2: memref<2x8x32xf32, #tpu.memory_space<vmem>>, %arg3: memref<1x6x32xf32, #tpu.memory_space<vmem>>, %arg4: memref<1x1x96xf32, #tpu.memory_space<vmem>>, %arg5: memref<1x1x64xf32, #tpu.memory_space<vmem>>, %arg6: memref<1x32x96xbf16, #tpu.memory_space<vmem>>, %arg7: memref<1x32x32xbf16, #tpu.memory_space<vmem>>, %arg8: memref<1x32x64xbf16, #tpu.memory_space<vmem>>, %arg9: memref<1x64x32xbf16, #tpu.memory_space<vmem>>, %arg10: memref<2x32xf32, #tpu.memory_space<vmem>>, %arg11: memref<2x8x32xf32, #tpu.memory_space<vmem>>, %arg12: memref<16x32xf32, #tpu.memory_space<vmem>>) attributes {dimension_semantics = [#tpu.dimension_semantics<parallel>, #tpu.dimension_semantics<arbitrary>], iteration_bounds = array<i64: 2, 2>, scalar_prefetch = 0 : i64, scratch_operands = 1 : i64, tpu.core_type = #tpu.core_type<tc>, window_params = [{transform_indices = @transform_0, window_bounds = array<i64: 2, 8, 32>}, {transform_indices = @transform_1, window_bounds = array<i64: 1, 6, 32>}, {transform_indices = @transform_2, window_bounds = array<i64: 1, 1, 96>}, {transform_indices = @transform_3, window_bounds = array<i64: 1, 1, 64>}, {transform_indices = @transform_4, window_bounds = array<i64: 1, 32, 96>}, {transform_indices = @transform_5, window_bounds = array<i64: 1, 32, 32>}, {transform_indices = @transform_6, window_bounds = array<i64: 1, 32, 64>}, {transform_indices = @transform_7, window_bounds = array<i64: 1, 64, 32>}, {pipeline_mode = #tpu.pipeline_mode<synchronous>, transform_indices = @transform_8, window_bounds = array<i64: 2, 32>}, {transform_indices = @transform_9, window_bounds = array<i64: 2, 8, 32>}]} {
    %c0_i32 = arith.constant 0 : i32
    %0 = arith.cmpi eq, %arg1, %c0_i32 : i32
    %1 = arith.extui %0 : i1 to i32
    %c0_i32_0 = arith.constant 0 : i32
    %2 = arith.cmpi ne, %1, %c0_i32_0 : i32
    scf.if %2 {
      %c0_50 = arith.constant 0 : index
      %c0_51 = arith.constant 0 : index
      %c0_52 = arith.constant 0 : index
      %153 = vector.load %arg2[%c0_50, %c0_51, %c0_52] : memref<2x8x32xf32, #tpu.memory_space<vmem>>, vector<2x8x32xf32>
      %154 = vector.shape_cast %153 : vector<2x8x32xf32> to vector<16x32xf32>
      %c0_53 = arith.constant 0 : index
      %c0_54 = arith.constant 0 : index
      %155 = vector.load %arg12[%c0_53, %c0_54] : memref<16x32xf32, #tpu.memory_space<vmem>>, vector<16x32xf32>
      tpu.vector_store %arg12[%c0_53, %c0_54], %154 {strides = array<i32>} : memref<16x32xf32, #tpu.memory_space<vmem>>, vector<16x32xf32>,
    } else {
    }
    %c0 = arith.constant 0 : index
    %c0_1 = arith.constant 0 : index
    %3 = vector.load %arg12[%c0, %c0_1] : memref<16x32xf32, #tpu.memory_space<vmem>>, vector<16x32xf32>
    %c0_2 = arith.constant 0 : index
    %c0_3 = arith.constant 0 : index
    %c0_4 = arith.constant 0 : index
    %4 = vector.load %arg3[%c0_2, %c0_3, %c0_4] : memref<1x6x32xf32, #tpu.memory_space<vmem>>, vector<1x6x32xf32>
    %5 = vector.shape_cast %4 : vector<1x6x32xf32> to vector<6x32xf32>
    %6 = vector.extract_strided_slice %5 {offsets = [0, 0], sizes = [1, 32], strides = [1, 1]} : vector<6x32xf32> to vector<1x32xf32>
    %7 = vector.extract_strided_slice %5 {offsets = [1, 0], sizes = [1, 32], strides = [1, 1]} : vector<6x32xf32> to vector<1x32xf32>
    %8 = vector.extract_strided_slice %5 {offsets = [2, 0], sizes = [1, 32], strides = [1, 1]} : vector<6x32xf32> to vector<1x32xf32>
    %9 = vector.extract_strided_slice %5 {offsets = [3, 0], sizes = [1, 32], strides = [1, 1]} : vector<6x32xf32> to vector<1x32xf32>
    %10 = vector.extract_strided_slice %5 {offsets = [4, 0], sizes = [1, 32], strides = [1, 1]} : vector<6x32xf32> to vector<1x32xf32>
    %11 = vector.extract_strided_slice %5 {offsets = [5, 0], sizes = [1, 32], strides = [1, 1]} : vector<6x32xf32> to vector<1x32xf32>
    %c0_5 = arith.constant 0 : index
    %c0_6 = arith.constant 0 : index
    %c0_7 = arith.constant 0 : index
    %12 = vector.load %arg4[%c0_5, %c0_6, %c0_7] : memref<1x1x96xf32, #tpu.memory_space<vmem>>, vector<1x1x96xf32>
    %13 = vector.shape_cast %12 : vector<1x1x96xf32> to vector<1x96xf32>
    %c0_8 = arith.constant 0 : index
    %c0_9 = arith.constant 0 : index
    %c0_10 = arith.constant 0 : index
    %14 = vector.load %arg5[%c0_8, %c0_9, %c0_10] : memref<1x1x64xf32, #tpu.memory_space<vmem>>, vector<1x1x64xf32>
    %15 = vector.shape_cast %14 : vector<1x1x64xf32> to vector<1x64xf32>
    %cst = arith.constant dense<0.000000e+00> : vector<16xf32>
    %16 = vector.multi_reduction <add>, %3, %cst [1] : vector<16x32xf32> to vector<16xf32>
    %17 = vector.shape_cast %16 : vector<16xf32> to vector<16x1xf32>
    %cst_11 = arith.constant 3.200000e+01 : f32
    %18 = vector.broadcast %cst_11 : f32 to vector<16x1xf32>
    %19 = arith.divf %17, %18 : vector<16x1xf32>
    %20 = vector.broadcast %19 : vector<16x1xf32> to vector<16x32xf32>
    %21 = arith.subf %3, %20 : vector<16x32xf32>
    %22 = arith.mulf %21, %21 : vector<16x32xf32>
    %cst_12 = arith.constant dense<0.000000e+00> : vector<16xf32>
    %23 = vector.multi_reduction <add>, %22, %cst_12 [1] : vector<16x32xf32> to vector<16xf32>
    %24 = vector.shape_cast %23 : vector<16xf32> to vector<16x1xf32>
    %cst_13 = arith.constant 3.200000e+01 : f32
    %25 = vector.broadcast %cst_13 : f32 to vector<16x1xf32>
    %26 = arith.divf %24, %25 : vector<16x1xf32>
    %27 = vector.broadcast %19 : vector<16x1xf32> to vector<16x32xf32>
    %28 = arith.subf %3, %27 : vector<16x32xf32>
    %cst_14 = arith.constant 9.99999997E-7 : f32
    %29 = vector.broadcast %cst_14 : f32 to vector<16x1xf32>
    %30 = arith.addf %26, %29 : vector<16x1xf32>
    %31 = math.rsqrt %30 : vector<16x1xf32>
    %32 = vector.broadcast %31 : vector<16x1xf32> to vector<16x32xf32>
    %33 = arith.mulf %28, %32 : vector<16x32xf32>
    %34 = vector.broadcast %6 : vector<1x32xf32> to vector<16x32xf32>
    %35 = arith.mulf %33, %34 : vector<16x32xf32>
    %36 = vector.broadcast %7 : vector<1x32xf32> to vector<16x32xf32>
    %37 = arith.addf %35, %36 : vector<16x32xf32>
    %38 = arith.truncf %37 : vector<16x32xf32> to vector<16x32xbf16>
    %c0_15 = arith.constant 0 : index
    %c0_16 = arith.constant 0 : index
    %c0_17 = arith.constant 0 : index
    %39 = vector.load %arg6[%c0_15, %c0_16, %c0_17] : memref<1x32x96xbf16, #tpu.memory_space<vmem>>, vector<1x32x96xbf16>
    %40 = vector.shape_cast %39 : vector<1x32x96xbf16> to vector<32x96xbf16>
    %cst_18 = arith.constant dense<0.000000e+00> : vector<16x96xf32>
    %41 = tpu.matmul %38, %40, %cst_18 {dimension_numbers = #tpu.dot_dimension_numbers<[1], [0], [0], [1], [0, 0, 1, 1], [], []>} : vector<16x32xbf16>, vector<32x96xbf16>, vector<16x96xf32> -> vector<16x96xf32>
    %42 = vector.broadcast %13 : vector<1x96xf32> to vector<16x96xf32>
    %43 = arith.addf %41, %42 : vector<16x96xf32>
    %44 = vector.extract_strided_slice %43 {offsets = [0, 0], sizes = [8, 96], strides = [1, 1]} : vector<16x96xf32> to vector<8x96xf32>
    %45 = vector.extract_strided_slice %44 {offsets = [0, 0], sizes = [8, 32], strides = [1, 1]} : vector<8x96xf32> to vector<8x32xf32>
    %46 = vector.shape_cast %45 : vector<8x32xf32> to vector<8x4x8xf32>
    %47 = tpu.transpose %46, [1, 0, 2] : vector<8x4x8xf32> -> vector<4x8x8xf32>
    %48 = arith.truncf %47 : vector<4x8x8xf32> to vector<4x8x8xbf16>
    %49 = vector.extract_strided_slice %44 {offsets = [0, 32], sizes = [8, 32], strides = [1, 1]} : vector<8x96xf32> to vector<8x32xf32>
    %50 = vector.shape_cast %49 : vector<8x32xf32> to vector<8x4x8xf32>
    %51 = tpu.transpose %50, [1, 0, 2] : vector<8x4x8xf32> -> vector<4x8x8xf32>
    %52 = arith.truncf %51 : vector<4x8x8xf32> to vector<4x8x8xbf16>
    %53 = vector.extract_strided_slice %44 {offsets = [0, 64], sizes = [8, 32], strides = [1, 1]} : vector<8x96xf32> to vector<8x32xf32>
    %54 = vector.shape_cast %53 : vector<8x32xf32> to vector<8x4x8xf32>
    %55 = tpu.transpose %54, [1, 0, 2] : vector<8x4x8xf32> -> vector<4x8x8xf32>
    %56 = arith.truncf %55 : vector<4x8x8xf32> to vector<4x8x8xbf16>
    "tpu.trace_start"() <{level = 10 : i32, message = "hqd,hkd->hqk"}> : () -> ()
    %cst_19 = arith.constant dense<0.000000e+00> : vector<4x8x8xf32>
    %57 = tpu.matmul %48, %52, %cst_19 {dimension_numbers = #tpu.dot_dimension_numbers<[2], [2], [1], [1], [0, 0, 0, 1, 1, 1], [0], [0]>} : vector<4x8x8xbf16>, vector<4x8x8xbf16>, vector<4x8x8xf32> -> vector<4x8x8xf32>
    "tpu.trace_stop"() : () -> ()
    %cst_20 = arith.constant dense<0xFF800000> : vector<4x8xf32>
    %58 = vector.multi_reduction <maximumf>, %57, %cst_20 [2] : vector<4x8x8xf32> to vector<4x8xf32>
    %59 = vector.shape_cast %58 : vector<4x8xf32> to vector<4x8x1xf32>
    %60 = vector.broadcast %59 : vector<4x8x1xf32> to vector<4x8x8xf32>
    %61 = arith.subf %57, %60 : vector<4x8x8xf32>
    %62 = math.exp %61 : vector<4x8x8xf32>
    %cst_21 = arith.constant dense<0.000000e+00> : vector<4x8xf32>
    %63 = vector.multi_reduction <add>, %62, %cst_21 [2] : vector<4x8x8xf32> to vector<4x8xf32>
    %64 = vector.shape_cast %63 : vector<4x8xf32> to vector<4x8x1xf32>
    %65 = vector.broadcast %64 : vector<4x8x1xf32> to vector<4x8x8xf32>
    %66 = arith.divf %62, %65 : vector<4x8x8xf32>
    %67 = arith.truncf %66 : vector<4x8x8xf32> to vector<4x8x8xbf16>
    "tpu.trace_start"() <{level = 10 : i32, message = "hqk,hkd->hqd"}> : () -> ()
    %cst_22 = arith.constant dense<0.000000e+00> : vector<4x8x8xf32>
    %68 = tpu.matmul %67, %56, %cst_22 {dimension_numbers = #tpu.dot_dimension_numbers<[2], [1], [1], [2], [0, 0, 0, 1, 1, 2], [0], [0]>} : vector<4x8x8xbf16>, vector<4x8x8xbf16>, vector<4x8x8xf32> -> vector<4x8x8xf32>
    "tpu.trace_stop"() : () -> ()
    %69 = tpu.transpose %68, [1, 0, 2] : vector<4x8x8xf32> -> vector<8x4x8xf32>
    %70 = vector.shape_cast %69 : vector<8x4x8xf32> to vector<8x32xf32>
    %71 = vector.extract_strided_slice %43 {offsets = [8, 0], sizes = [8, 96], strides = [1, 1]} : vector<16x96xf32> to vector<8x96xf32>
    %72 = vector.extract_strided_slice %71 {offsets = [0, 0], sizes = [8, 32], strides = [1, 1]} : vector<8x96xf32> to vector<8x32xf32>
    %73 = vector.shape_cast %72 : vector<8x32xf32> to vector<8x4x8xf32>
    %74 = tpu.transpose %73, [1, 0, 2] : vector<8x4x8xf32> -> vector<4x8x8xf32>
    %75 = arith.truncf %74 : vector<4x8x8xf32> to vector<4x8x8xbf16>
    %76 = vector.extract_strided_slice %71 {offsets = [0, 32], sizes = [8, 32], strides = [1, 1]} : vector<8x96xf32> to vector<8x32xf32>
    %77 = vector.shape_cast %76 : vector<8x32xf32> to vector<8x4x8xf32>
    %78 = tpu.transpose %77, [1, 0, 2] : vector<8x4x8xf32> -> vector<4x8x8xf32>
    %79 = arith.truncf %78 : vector<4x8x8xf32> to vector<4x8x8xbf16>
    %80 = vector.extract_strided_slice %71 {offsets = [0, 64], sizes = [8, 32], strides = [1, 1]} : vector<8x96xf32> to vector<8x32xf32>
    %81 = vector.shape_cast %80 : vector<8x32xf32> to vector<8x4x8xf32>
    %82 = tpu.transpose %81, [1, 0, 2] : vector<8x4x8xf32> -> vector<4x8x8xf32>
    %83 = arith.truncf %82 : vector<4x8x8xf32> to vector<4x8x8xbf16>
    "tpu.trace_start"() <{level = 10 : i32, message = "hqd,hkd->hqk"}> : () -> ()
    %cst_23 = arith.constant dense<0.000000e+00> : vector<4x8x8xf32>
    %84 = tpu.matmul %75, %79, %cst_23 {dimension_numbers = #tpu.dot_dimension_numbers<[2], [2], [1], [1], [0, 0, 0, 1, 1, 1], [0], [0]>} : vector<4x8x8xbf16>, vector<4x8x8xbf16>, vector<4x8x8xf32> -> vector<4x8x8xf32>
    "tpu.trace_stop"() : () -> ()
    %cst_24 = arith.constant dense<0xFF800000> : vector<4x8xf32>
    %85 = vector.multi_reduction <maximumf>, %84, %cst_24 [2] : vector<4x8x8xf32> to vector<4x8xf32>
    %86 = vector.shape_cast %85 : vector<4x8xf32> to vector<4x8x1xf32>
    %87 = vector.broadcast %86 : vector<4x8x1xf32> to vector<4x8x8xf32>
    %88 = arith.subf %84, %87 : vector<4x8x8xf32>
    %89 = math.exp %88 : vector<4x8x8xf32>
    %cst_25 = arith.constant dense<0.000000e+00> : vector<4x8xf32>
    %90 = vector.multi_reduction <add>, %89, %cst_25 [2] : vector<4x8x8xf32> to vector<4x8xf32>
    %91 = vector.shape_cast %90 : vector<4x8xf32> to vector<4x8x1xf32>
    %92 = vector.broadcast %91 : vector<4x8x1xf32> to vector<4x8x8xf32>
    %93 = arith.divf %89, %92 : vector<4x8x8xf32>
    %94 = arith.truncf %93 : vector<4x8x8xf32> to vector<4x8x8xbf16>
    "tpu.trace_start"() <{level = 10 : i32, message = "hqk,hkd->hqd"}> : () -> ()
    %cst_26 = arith.constant dense<0.000000e+00> : vector<4x8x8xf32>
    %95 = tpu.matmul %94, %83, %cst_26 {dimension_numbers = #tpu.dot_dimension_numbers<[2], [1], [1], [2], [0, 0, 0, 1, 1, 2], [0], [0]>} : vector<4x8x8xbf16>, vector<4x8x8xbf16>, vector<4x8x8xf32> -> vector<4x8x8xf32>
    "tpu.trace_stop"() : () -> ()
    %96 = tpu.transpose %95, [1, 0, 2] : vector<4x8x8xf32> -> vector<8x4x8xf32>
    %97 = vector.shape_cast %96 : vector<8x4x8xf32> to vector<8x32xf32>
    %98 = tpu.concatenate %70, %97 in 0 : vector<8x32xf32>, vector<8x32xf32> -> vector<16x32xf32>
    %99 = arith.truncf %98 : vector<16x32xf32> to vector<16x32xbf16>
    %c0_27 = arith.constant 0 : index
    %c0_28 = arith.constant 0 : index
    %c0_29 = arith.constant 0 : index
    %100 = vector.load %arg7[%c0_27, %c0_28, %c0_29] : memref<1x32x32xbf16, #tpu.memory_space<vmem>>, vector<1x32x32xbf16>
    %101 = vector.shape_cast %100 : vector<1x32x32xbf16> to vector<32x32xbf16>
    %cst_30 = arith.constant dense<0.000000e+00> : vector<16x32xf32>
    %102 = tpu.matmul %99, %101, %cst_30 {dimension_numbers = #tpu.dot_dimension_numbers<[1], [0], [0], [1], [0, 0, 1, 1], [], []>} : vector<16x32xbf16>, vector<32x32xbf16>, vector<16x32xf32> -> vector<16x32xf32>
    %103 = vector.broadcast %8 : vector<1x32xf32> to vector<16x32xf32>
    %104 = arith.addf %102, %103 : vector<16x32xf32>
    %105 = arith.addf %3, %104 : vector<16x32xf32>
    %cst_31 = arith.constant dense<0.000000e+00> : vector<16xf32>
    %106 = vector.multi_reduction <add>, %105, %cst_31 [1] : vector<16x32xf32> to vector<16xf32>
    %107 = vector.shape_cast %106 : vector<16xf32> to vector<16x1xf32>
    %cst_32 = arith.constant 3.200000e+01 : f32
    %108 = vector.broadcast %cst_32 : f32 to vector<16x1xf32>
    %109 = arith.divf %107, %108 : vector<16x1xf32>
    %110 = vector.broadcast %109 : vector<16x1xf32> to vector<16x32xf32>
    %111 = arith.subf %105, %110 : vector<16x32xf32>
    %112 = arith.mulf %111, %111 : vector<16x32xf32>
    %cst_33 = arith.constant dense<0.000000e+00> : vector<16xf32>
    %113 = vector.multi_reduction <add>, %112, %cst_33 [1] : vector<16x32xf32> to vector<16xf32>
    %114 = vector.shape_cast %113 : vector<16xf32> to vector<16x1xf32>
    %cst_34 = arith.constant 3.200000e+01 : f32
    %115 = vector.broadcast %cst_34 : f32 to vector<16x1xf32>
    %116 = arith.divf %114, %115 : vector<16x1xf32>
    %117 = vector.broadcast %109 : vector<16x1xf32> to vector<16x32xf32>
    %118 = arith.subf %105, %117 : vector<16x32xf32>
    %cst_35 = arith.constant 9.99999997E-7 : f32
    %119 = vector.broadcast %cst_35 : f32 to vector<16x1xf32>
    %120 = arith.addf %116, %119 : vector<16x1xf32>
    %121 = math.rsqrt %120 : vector<16x1xf32>
    %122 = vector.broadcast %121 : vector<16x1xf32> to vector<16x32xf32>
    %123 = arith.mulf %118, %122 : vector<16x32xf32>
    %124 = vector.broadcast %9 : vector<1x32xf32> to vector<16x32xf32>
    %125 = arith.mulf %123, %124 : vector<16x32xf32>
    %126 = vector.broadcast %10 : vector<1x32xf32> to vector<16x32xf32>
    %127 = arith.addf %125, %126 : vector<16x32xf32>
    %128 = arith.truncf %127 : vector<16x32xf32> to vector<16x32xbf16>
    %c0_36 = arith.constant 0 : index
    %c0_37 = arith.constant 0 : index
    %c0_38 = arith.constant 0 : index
    %129 = vector.load %arg8[%c0_36, %c0_37, %c0_38] : memref<1x32x64xbf16, #tpu.memory_space<vmem>>, vector<1x32x64xbf16>
    %130 = vector.shape_cast %129 : vector<1x32x64xbf16> to vector<32x64xbf16>
    %cst_39 = arith.constant dense<0.000000e+00> : vector<16x64xf32>
    %131 = tpu.matmul %128, %130, %cst_39 {dimension_numbers = #tpu.dot_dimension_numbers<[1], [0], [0], [1], [0, 0, 1, 1], [], []>} : vector<16x32xbf16>, vector<32x64xbf16>, vector<16x64xf32> -> vector<16x64xf32>
    %132 = vector.broadcast %15 : vector<1x64xf32> to vector<16x64xf32>
    %133 = arith.addf %131, %132 : vector<16x64xf32>
    %cst_40 = arith.constant 5.000000e-01 : f32
    %134 = vector.broadcast %cst_40 : f32 to vector<16x64xf32>
    %135 = arith.mulf %134, %133 : vector<16x64xf32>
    %cst_41 = arith.constant 0.707106769 : f32
    %136 = vector.broadcast %cst_41 : f32 to vector<16x64xf32>
    %137 = arith.mulf %133, %136 : vector<16x64xf32>
    %138 = math.erf %137 : vector<16x64xf32>
    %cst_42 = arith.constant 1.000000e+00 : f32
    %139 = vector.broadcast %cst_42 : f32 to vector<16x64xf32>
    %140 = arith.addf %139, %138 : vector<16x64xf32>
    %141 = arith.mulf %135, %140 : vector<16x64xf32>
    %142 = arith.truncf %141 : vector<16x64xf32> to vector<16x64xbf16>
    %c0_43 = arith.constant 0 : index
    %c0_44 = arith.constant 0 : index
    %c0_45 = arith.constant 0 : index
    %143 = vector.load %arg9[%c0_43, %c0_44, %c0_45] : memref<1x64x32xbf16, #tpu.memory_space<vmem>>, vector<1x64x32xbf16>
    %144 = vector.shape_cast %143 : vector<1x64x32xbf16> to vector<64x32xbf16>
    %cst_46 = arith.constant dense<0.000000e+00> : vector<16x32xf32>
    %145 = tpu.matmul %142, %144, %cst_46 {dimension_numbers = #tpu.dot_dimension_numbers<[1], [0], [0], [1], [0, 0, 1, 1], [], []>} : vector<16x64xbf16>, vector<64x32xbf16>, vector<16x32xf32> -> vector<16x32xf32>
    %146 = vector.broadcast %11 : vector<1x32xf32> to vector<16x32xf32>
    %147 = arith.addf %145, %146 : vector<16x32xf32>
    %148 = arith.addf %105, %147 : vector<16x32xf32>
    %c0_47 = arith.constant 0 : index
    %c0_48 = arith.constant 0 : index
    %149 = vector.load %arg12[%c0_47, %c0_48] : memref<16x32xf32, #tpu.memory_space<vmem>>, vector<16x32xf32>
    tpu.vector_store %arg12[%c0_47, %c0_48], %148 {strides = array<i32>} : memref<16x32xf32, #tpu.memory_space<vmem>>, vector<16x32xf32>,
    %c1_i32 = arith.constant 1 : i32
    %150 = arith.cmpi eq, %arg1, %c1_i32 : i32
    %151 = arith.extui %150 : i1 to i32
    %c0_i32_49 = arith.constant 0 : i32
    %152 = arith.cmpi ne, %151, %c0_i32_49 : i32
    scf.if %152 {
      %c0_50 = arith.constant 0 : index
      %c0_51 = arith.constant 0 : index
      %153 = vector.load %arg10[%c0_50, %c0_51] : memref<2x32xf32, #tpu.memory_space<vmem>>, vector<2x32xf32>
      %154 = vector.extract_strided_slice %153 {offsets = [0, 0], sizes = [1, 32], strides = [1, 1]} : vector<2x32xf32> to vector<1x32xf32>
      %155 = vector.extract_strided_slice %153 {offsets = [1, 0], sizes = [1, 32], strides = [1, 1]} : vector<2x32xf32> to vector<1x32xf32>
      %cst_52 = arith.constant dense<0.000000e+00> : vector<16xf32>
      %156 = vector.multi_reduction <add>, %148, %cst_52 [1] : vector<16x32xf32> to vector<16xf32>
      %157 = vector.shape_cast %156 : vector<16xf32> to vector<16x1xf32>
      %cst_53 = arith.constant 3.200000e+01 : f32
      %158 = vector.broadcast %cst_53 : f32 to vector<16x1xf32>
      %159 = arith.divf %157, %158 : vector<16x1xf32>
      %160 = vector.broadcast %159 : vector<16x1xf32> to vector<16x32xf32>
      %161 = arith.subf %148, %160 : vector<16x32xf32>
      %162 = arith.mulf %161, %161 : vector<16x32xf32>
      %cst_54 = arith.constant dense<0.000000e+00> : vector<16xf32>
      %163 = vector.multi_reduction <add>, %162, %cst_54 [1] : vector<16x32xf32> to vector<16xf32>
      %164 = vector.shape_cast %163 : vector<16xf32> to vector<16x1xf32>
      %cst_55 = arith.constant 3.200000e+01 : f32
      %165 = vector.broadcast %cst_55 : f32 to vector<16x1xf32>
      %166 = arith.divf %164, %165 : vector<16x1xf32>
      %167 = vector.broadcast %159 : vector<16x1xf32> to vector<16x32xf32>
      %168 = arith.subf %148, %167 : vector<16x32xf32>
      %cst_56 = arith.constant 9.99999997E-7 : f32
      %169 = vector.broadcast %cst_56 : f32 to vector<16x1xf32>
      %170 = arith.addf %166, %169 : vector<16x1xf32>
      %171 = math.rsqrt %170 : vector<16x1xf32>
      %172 = vector.broadcast %171 : vector<16x1xf32> to vector<16x32xf32>
      %173 = arith.mulf %168, %172 : vector<16x32xf32>
      %174 = vector.broadcast %154 : vector<1x32xf32> to vector<16x32xf32>
      %175 = arith.mulf %173, %174 : vector<16x32xf32>
      %176 = vector.broadcast %155 : vector<1x32xf32> to vector<16x32xf32>
      %177 = arith.addf %175, %176 : vector<16x32xf32>
      %178 = vector.shape_cast %177 : vector<16x32xf32> to vector<2x8x32xf32>
      %c0_57 = arith.constant 0 : index
      %c0_58 = arith.constant 0 : index
      %c0_59 = arith.constant 0 : index
      %179 = vector.load %arg11[%c0_57, %c0_58, %c0_59] : memref<2x8x32xf32, #tpu.memory_space<vmem>>, vector<2x8x32xf32>
      tpu.vector_store %arg11[%c0_57, %c0_58, %c0_59], %178 {strides = array<i32>} : memref<2x8x32xf32, #tpu.memory_space<vmem>>, vector<2x8x32xf32>,
    } else {
    }
    return
  }
  func.func @transform_0(%arg0: i32, %arg1: i32) -> (i32, i32, i32) {
    %c0_i32 = arith.constant 0 : i32
    %c0_i32_0 = arith.constant 0 : i32
    %c0_i32_1 = arith.constant 0 : i32
    return %arg0, %c0_i32, %c0_i32_0 : i32, i32, i32
  }
  func.func @transform_1(%arg0: i32, %arg1: i32) -> (i32, i32, i32) {
    %c0_i32 = arith.constant 0 : i32
    %c0_i32_0 = arith.constant 0 : i32
    %c0_i32_1 = arith.constant 0 : i32
    return %arg1, %c0_i32, %c0_i32_0 : i32, i32, i32
  }
  func.func @transform_2(%arg0: i32, %arg1: i32) -> (i32, i32, i32) {
    %c0_i32 = arith.constant 0 : i32
    %c0_i32_0 = arith.constant 0 : i32
    %c0_i32_1 = arith.constant 0 : i32
    return %arg1, %c0_i32, %c0_i32_0 : i32, i32, i32
  }
  func.func @transform_3(%arg0: i32, %arg1: i32) -> (i32, i32, i32) {
    %c0_i32 = arith.constant 0 : i32
    %c0_i32_0 = arith.constant 0 : i32
    %c0_i32_1 = arith.constant 0 : i32
    return %arg1, %c0_i32, %c0_i32_0 : i32, i32, i32
  }
  func.func @transform_4(%arg0: i32, %arg1: i32) -> (i32, i32, i32) {
    %c0_i32 = arith.constant 0 : i32
    %c0_i32_0 = arith.constant 0 : i32
    %c0_i32_1 = arith.constant 0 : i32
    return %arg1, %c0_i32, %c0_i32_0 : i32, i32, i32
  }
  func.func @transform_5(%arg0: i32, %arg1: i32) -> (i32, i32, i32) {
    %c0_i32 = arith.constant 0 : i32
    %c0_i32_0 = arith.constant 0 : i32
    %c0_i32_1 = arith.constant 0 : i32
    return %arg1, %c0_i32, %c0_i32_0 : i32, i32, i32
  }
  func.func @transform_6(%arg0: i32, %arg1: i32) -> (i32, i32, i32) {
    %c0_i32 = arith.constant 0 : i32
    %c0_i32_0 = arith.constant 0 : i32
    %c0_i32_1 = arith.constant 0 : i32
    return %arg1, %c0_i32, %c0_i32_0 : i32, i32, i32
  }
  func.func @transform_7(%arg0: i32, %arg1: i32) -> (i32, i32, i32) {
    %c0_i32 = arith.constant 0 : i32
    %c0_i32_0 = arith.constant 0 : i32
    %c0_i32_1 = arith.constant 0 : i32
    return %arg1, %c0_i32, %c0_i32_0 : i32, i32, i32
  }
  func.func @transform_8(%arg0: i32, %arg1: i32) -> (i32, i32) {
    %c0_i32 = arith.constant 0 : i32
    %c0_i32_0 = arith.constant 0 : i32
    %c0_i32_1 = arith.constant 0 : i32
    return %c0_i32, %c0_i32_0 : i32, i32
  }
  func.func @transform_9(%arg0: i32, %arg1: i32) -> (i32, i32, i32) {
    %c0_i32 = arith.constant 0 : i32
    %c0_i32_0 = arith.constant 0 : i32
    %c0_i32_1 = arith.constant 0 : i32
    return %arg0, %c0_i32, %c0_i32_0 : i32, i32, i32
  }
}

</mosaic_0001>

<llo_original>
// kernel: tpu_custom_call.1
$region0: #{tpu_custom_call.1}
  #allocation0 [shape = 'u32[]', space=smem, size = 0x4, offset = 0x4, fixed_abs, tag = 'smem constant byte address 0x4 - core index']
  #allocation1 [shape = 'u32[72,128]{1,0:T(1,128)}', space=vmem, size = 0x9000, scoped, tag = 'internal scratch']
  #allocation2 [shape = 'f32[16,32]{1,0:T(8,128)}', space=vmem, size = 0x2000, scoped, tag = 'scratch operand']
  %s0 = inlined_call_operand.vmem [shape: f32[4,8,32], index: 0, kind: input, shape index: {}]
  %s1 = inlined_call_operand.vmem [shape: f32[2,6,32], index: 1, kind: input, shape index: {}]
  %s2 = inlined_call_operand.vmem [shape: f32[2,1,96], index: 2, kind: input, shape index: {}]
  %s3 = inlined_call_operand.hbm [shape: f32[2,1,64], index: 3, kind: input, shape index: {}]
  %s4 = inlined_call_operand.vmem [shape: bf16[2,32,96], index: 4, kind: input, shape index: {}]
  %s5 = inlined_call_operand.vmem [shape: bf16[2,32,32], index: 5, kind: input, shape index: {}]
  %s6 = inlined_call_operand.hbm [shape: bf16[2,32,64], index: 6, kind: input, shape index: {}]
  %s7 = inlined_call_operand.vmem [shape: bf16[2,64,32], index: 7, kind: input, shape index: {}]
  %s8 = inlined_call_operand.hbm [shape: f32[2,32], index: 8, kind: input, shape index: {}]
  %s9 = inlined_call_operand.hbm [shape: f32[4,8,32], index: 9, kind: output, shape index: {}]
  %s10 = sld [smem:[#allocation0]]
  $region89: #{tpu_custom_call.1} parent=0
    _
  %s12 = ssub.s32 1, %s10
  %s13 = scalar_select 0, %s12, %s10
  $region1: #{tpu_custom_call.1} parent=0
    #allocation3 [shape = 'u8[1024]{0}', space=vmem, size = 0x400, scoped, tag = 'input window, operand 3']
    #allocation4 [shape = 's32[2]{0}', space=sflag, size = 0x8, scoped, tag = 'scoped memory for tpu_custom_call.1']
    #allocation5 [shape = 's32[2]{0}', space=sflag, size = 0x8, scoped, tag = 'scoped memory for tpu_custom_call.1']
    #allocation6 [shape = 'u8[16384]{0}', space=vmem, size = 0x4000, scoped, tag = 'input window, operand 6']
    #allocation7 [shape = 's32[2]{0}', space=sflag, size = 0x8, scoped, tag = 'scoped memory for tpu_custom_call.1']
    #allocation8 [shape = 'u8[1024]{0}', space=vmem, size = 0x400, scoped, tag = 'input window, operand 8, single buffered']
    #allocation9 [shape = 'u8[16384]{0}', space=vmem, size = 0x4000, scoped, tag = 'output window, operand 0']
    %14 = vsyncpa [#allocation4], 0
    %s15 = scalar_lea.sflag [#allocation4], 1
    %16 = vsyncpa %s15, 0
    %17 = vsyncpa [#allocation7], 0
    %s18 = scalar_lea.sflag [#allocation7], 1
    %19 = vsyncpa %s18, 0
    %20 = vsyncpa [#allocation5], 0
    %s21 = scalar_lea.sflag [#allocation5], 1
    %22 = vsyncpa %s21, 0
    loop: start=0, step=1, limit=6
    $region2: #{tpu_custom_call.1} parent=1 // loop_pre_header
      _
    $region3: #{tpu_custom_call.1} parent=1 // loop_header
      %s24 = sphi 0, %s28
      %p25 = scmp.ge.s32.totalorder %s24, 6
      %s31 = sphi 0, %s43
      %s32 = sphi 0, %s39
      %s33 = sphi 0, %s31
      %s34 = sphi 0, %s32
      %s35 = sphi 0, %s33
      %s36 = sphi 0, %s34
      %s46 = sphi 0, %s48
      %s49 = sphi 0, %s46
      %s50 = sphi 0, %s49
      %s66 = sphi 0, %s50
      %s72 = sphi 0, %s74
      %s75 = sphi 0, %s72
      %s76 = sphi 0, %s75
      %s92 = sphi 0, %s76
      %s98 = sphi 0, %s100
      %s101 = sphi 0, %s98
      %s102 = sphi 0, %s101
      %s118 = sphi 0, %s102
      %s124 = sphi 0, %s126
      %s127 = sphi 0, %s124
      %s128 = sphi 0, %s127
      %s144 = sphi 0, %s128
      %s150 = sphi 0, %s152
      %s153 = sphi 0, %s150
      %s154 = sphi 0, %s153
      %s170 = sphi 0, %s154
      %s176 = sphi 0, %s178
      %s179 = sphi 0, %s176
      %s180 = sphi 0, %s179
      %s196 = sphi 0, %s180
      %s202 = sphi 0, %s204
      %s205 = sphi 0, %s202
      %s206 = sphi 0, %s205
      %s222 = sphi 0, %s206
      %s228 = sphi 0, %s230
      %s231 = sphi 0, %s228
      %s232 = sphi 0, %s231
      %s248 = sphi 0, %s232
      %s252 = sphi 0, %s252
      %s254 = sphi 0, %s252
      %s255 = sphi 0, %s254
      %s269 = sphi 0, %s255
      %s275 = sphi 0, %s277
      %s278 = sphi 0, %s275
      %s279 = sphi 0, %s278
      %s295 = sphi 0, %s279
    $region4: #{tpu_custom_call.1} parent=1 // loop_header_branch
      %27 = sbr.rel (%p25) target = $region8
    $region5: #{tpu_custom_call.1} parent=1 // loop_body
      %s29 = ssub.s32 %s24, 1
      %s30 = ssub.s32 %s24, 2
      %s37 = sadd.s32 1, %s32
      %p38 = scmp.ge.s32.totalorder %s37, 2
      %s39 = scalar_select %p38, 0, %s37
      %s40 = sadd.s32 1, %s31
      %s41 = scalar_select %p38, %s40, %s31
      %p42 = scmp.ge.s32.totalorder %s41, 2
      %s43 = scalar_select %p42, 0, %s41
      %s44 = ssub.s32 %s31, %s43
      %p45 = scmp.eq.s32.totalorder %s44, 0
      %s47 = sadd.s32 %s46, 1
      %s48 = scalar_select %p45, %s46, %s47
      %p51 = pneg %p45
      %p52 = scmp.eq.s32.totalorder %s24, 3
      %p53 = por %p51, %p52
      %p54 = scmp.ne.s32.totalorder %s46, %s49
      %p55 = scmp.eq.s32.totalorder %s24, 0
      %p56 = por %p54, %p55
      %p57 = scmp.ne.s32.totalorder %s46, %s49
      %p58 = scmp.eq.s32.totalorder %s29, 3
      %p59 = por %p57, %p58
      %p60 = scmp.ne.s32.totalorder %s49, %s50
      %p61 = scmp.eq.s32.totalorder %s29, 0
      %p62 = por %p60, %p61
      %p63 = scmp.ne.s32.totalorder %s49, %s50
      %p64 = scmp.eq.s32.totalorder %s30, 3
      %p65 = por %p63, %p64
      %p67 = scmp.ne.s32.totalorder %s50, %s66
      %p68 = scmp.eq.s32.totalorder %s30, 0
      %p69 = por %p67, %p68
      %s70 = ssub.s32 %s32, %s39
      %p71 = scmp.eq.s32.totalorder %s70, 0
      %s73 = sadd.s32 %s72, 1
      %s74 = scalar_select %p71, %s72, %s73
      %p77 = pneg %p71
      %p78 = scmp.eq.s32.totalorder %s24, 3
      %p79 = por %p77, %p78
      %p80 = scmp.ne.s32.totalorder %s72, %s75
      %p81 = scmp.eq.s32.totalorder %s24, 0
      %p82 = por %p80, %p81
      %p83 = scmp.ne.s32.totalorder %s72, %s75
      %p84 = scmp.eq.s32.totalorder %s29, 3
      %p85 = por %p83, %p84
      %p86 = scmp.ne.s32.totalorder %s75, %s76
      %p87 = scmp.eq.s32.totalorder %s29, 0
      %p88 = por %p86, %p87
      %p89 = scmp.ne.s32.totalorder %s75, %s76
      %p90 = scmp.eq.s32.totalorder %s30, 3
      %p91 = por %p89, %p90
      %p93 = scmp.ne.s32.totalorder %s76, %s92
      %p94 = scmp.eq.s32.totalorder %s30, 0
      %p95 = por %p93, %p94
      %s96 = ssub.s32 %s32, %s39
      %p97 = scmp.eq.s32.totalorder %s96, 0
      %s99 = sadd.s32 %s98, 1
      %s100 = scalar_select %p97, %s98, %s99
      %p103 = pneg %p97
      %p104 = scmp.eq.s32.totalorder %s24, 3
      %p105 = por %p103, %p104
      %p106 = scmp.ne.s32.totalorder %s98, %s101
      %p107 = scmp.eq.s32.totalorder %s24, 0
      %p108 = por %p106, %p107
      %p109 = scmp.ne.s32.totalorder %s98, %s101
      %p110 = scmp.eq.s32.totalorder %s29, 3
      %p111 = por %p109, %p110
      %p112 = scmp.ne.s32.totalorder %s101, %s102
      %p113 = scmp.eq.s32.totalorder %s29, 0
      %p114 = por %p112, %p113
      %p115 = scmp.ne.s32.totalorder %s101, %s102
      %p116 = scmp.eq.s32.totalorder %s30, 3
      %p117 = por %p115, %p116
      %p119 = scmp.ne.s32.totalorder %s102, %s118
      %p120 = scmp.eq.s32.totalorder %s30, 0
      %p121 = por %p119, %p120
      %s122 = ssub.s32 %s32, %s39
      %p123 = scmp.eq.s32.totalorder %s122, 0
      %s125 = sadd.s32 %s124, 1
      %s126 = scalar_select %p123, %s124, %s125
      %p129 = pneg %p123
      %p130 = scmp.eq.s32.totalorder %s24, 3
      %p131 = por %p129, %p130
      %p132 = scmp.ne.s32.totalorder %s124, %s127
      %p133 = scmp.eq.s32.totalorder %s24, 0
      %p134 = por %p132, %p133
      %p135 = scmp.ne.s32.totalorder %s124, %s127
      %p136 = scmp.eq.s32.totalorder %s29, 3
      %p137 = por %p135, %p136
      %p138 = scmp.ne.s32.totalorder %s127, %s128
      %p139 = scmp.eq.s32.totalorder %s29, 0
      %p140 = por %p138, %p139
      %p141 = scmp.ne.s32.totalorder %s127, %s128
      %p142 = scmp.eq.s32.totalorder %s30, 3
      %p143 = por %p141, %p142
      %p145 = scmp.ne.s32.totalorder %s128, %s144
      %p146 = scmp.eq.s32.totalorder %s30, 0
      %p147 = por %p145, %p146
      %s148 = ssub.s32 %s32, %s39
      %p149 = scmp.eq.s32.totalorder %s148, 0
      %s151 = sadd.s32 %s150, 1
      %s152 = scalar_select %p149, %s150, %s151
      %p155 = pneg %p149
      %p156 = scmp.eq.s32.totalorder %s24, 3
      %p157 = por %p155, %p156
      %p158 = scmp.ne.s32.totalorder %s150, %s153
      %p159 = scmp.eq.s32.totalorder %s24, 0
      %p160 = por %p158, %p159
      %p161 = scmp.ne.s32.totalorder %s150, %s153
      %p162 = scmp.eq.s32.totalorder %s29, 3
      %p163 = por %p161, %p162
      %p164 = scmp.ne.s32.totalorder %s153, %s154
      %p165 = scmp.eq.s32.totalorder %s29, 0
      %p166 = por %p164, %p165
      %p167 = scmp.ne.s32.totalorder %s153, %s154
      %p168 = scmp.eq.s32.totalorder %s30, 3
      %p169 = por %p167, %p168
      %p171 = scmp.ne.s32.totalorder %s154, %s170
      %p172 = scmp.eq.s32.totalorder %s30, 0
      %p173 = por %p171, %p172
      %s174 = ssub.s32 %s32, %s39
      %p175 = scmp.eq.s32.totalorder %s174, 0
      %s177 = sadd.s32 %s176, 1
      %s178 = scalar_select %p175, %s176, %s177
      %p181 = pneg %p175
      %p182 = scmp.eq.s32.totalorder %s24, 3
      %p183 = por %p181, %p182
      %p184 = scmp.ne.s32.totalorder %s176, %s179
      %p185 = scmp.eq.s32.totalorder %s24, 0
      %p186 = por %p184, %p185
      %p187 = scmp.ne.s32.totalorder %s176, %s179
      %p188 = scmp.eq.s32.totalorder %s29, 3
      %p189 = por %p187, %p188
      %p190 = scmp.ne.s32.totalorder %s179, %s180
      %p191 = scmp.eq.s32.totalorder %s29, 0
      %p192 = por %p190, %p191
      %p193 = scmp.ne.s32.totalorder %s179, %s180
      %p194 = scmp.eq.s32.totalorder %s30, 3
      %p195 = por %p193, %p194
      %p197 = scmp.ne.s32.totalorder %s180, %s196
      %p198 = scmp.eq.s32.totalorder %s30, 0
      %p199 = por %p197, %p198
      %s200 = ssub.s32 %s32, %s39
      %p201 = scmp.eq.s32.totalorder %s200, 0
      %s203 = sadd.s32 %s202, 1
      %s204 = scalar_select %p201, %s202, %s203
      %p207 = pneg %p201
      %p208 = scmp.eq.s32.totalorder %s24, 3
      %p209 = por %p207, %p208
      %p210 = scmp.ne.s32.totalorder %s202, %s205
      %p211 = scmp.eq.s32.totalorder %s24, 0
      %p212 = por %p210, %p211
      %p213 = scmp.ne.s32.totalorder %s202, %s205
      %p214 = scmp.eq.s32.totalorder %s29, 3
      %p215 = por %p213, %p214
      %p216 = scmp.ne.s32.totalorder %s205, %s206
      %p217 = scmp.eq.s32.totalorder %s29, 0
      %p218 = por %p216, %p217
      %p219 = scmp.ne.s32.totalorder %s205, %s206
      %p220 = scmp.eq.s32.totalorder %s30, 3
      %p221 = por %p219, %p220
      %p223 = scmp.ne.s32.totalorder %s206, %s222
      %p224 = scmp.eq.s32.totalorder %s30, 0
      %p225 = por %p223, %p224
      %s226 = ssub.s32 %s32, %s39
      %p227 = scmp.eq.s32.totalorder %s226, 0
      %s229 = sadd.s32 %s228, 1
      %s230 = scalar_select %p227, %s228, %s229
      %p233 = pneg %p227
      %p234 = scmp.eq.s32.totalorder %s24, 3
      %p235 = por %p233, %p234
      %p236 = scmp.ne.s32.totalorder %s228, %s231
      %p237 = scmp.eq.s32.totalorder %s24, 0
      %p238 = por %p236, %p237
      %p239 = scmp.ne.s32.totalorder %s228, %s231
      %p240 = scmp.eq.s32.totalorder %s29, 3
      %p241 = por %p239, %p240
      %p242 = scmp.ne.s32.totalorder %s231, %s232
      %p243 = scmp.eq.s32.totalorder %s29, 0
      %p244 = por %p242, %p243
      %p245 = scmp.ne.s32.totalorder %s231, %s232
      %p246 = scmp.eq.s32.totalorder %s30, 3
      %p247 = por %p245, %p246
      %p249 = scmp.ne.s32.totalorder %s232, %s248
      %p250 = scmp.eq.s32.totalorder %s30, 0
      %p251 = por %p249, %p250
      %s253 = sadd.s32 %s252, 1
      %p256 = scmp.eq.s32.totalorder %s24, 3
      %p257 = scmp.ne.s32.totalorder %s252, %s254
      %p258 = scmp.eq.s32.totalorder %s24, 0
      %p259 = por %p257, %p258
      %p260 = scmp.ne.s32.totalorder %s252, %s254
      %p261 = scmp.eq.s32.totalorder %s29, 3
      %p262 = por %p260, %p261
      %p263 = scmp.ne.s32.totalorder %s254, %s255
      %p264 = scmp.eq.s32.totalorder %s29, 0
      %p265 = por %p263, %p264
      %p266 = scmp.ne.s32.totalorder %s254, %s255
      %p267 = scmp.eq.s32.totalorder %s30, 3
      %p268 = por %p266, %p267
      %p270 = scmp.ne.s32.totalorder %s255, %s269
      %p271 = scmp.eq.s32.totalorder %s30, 0
      %p272 = por %p270, %p271
      %s273 = ssub.s32 %s31, %s43
      %p274 = scmp.eq.s32.totalorder %s273, 0
      %s276 = sadd.s32 %s275, 1
      %s277 = scalar_select %p274, %s275, %s276
      %p280 = pneg %p274
      %p281 = scmp.eq.s32.totalorder %s24, 3
      %p282 = por %p280, %p281
      %p283 = scmp.ne.s32.totalorder %s275, %s278
      %p284 = scmp.eq.s32.totalorder %s24, 0
      %p285 = por %p283, %p284
      %p286 = scmp.ne.s32.totalorder %s275, %s278
      %p287 = scmp.eq.s32.totalorder %s29, 3
      %p288 = por %p286, %p287
      %p289 = scmp.ne.s32.totalorder %s278, %s279
      %p290 = scmp.eq.s32.totalorder %s29, 0
      %p291 = por %p289, %p290
      %p292 = scmp.ne.s32.totalorder %s278, %s279
      %p293 = scmp.eq.s32.totalorder %s30, 3
      %p294 = por %p292, %p293
      %p296 = scmp.ne.s32.totalorder %s279, %s295
      %p297 = scmp.eq.s32.totalorder %s30, 0
      %p298 = por %p296, %p297
      %p299 = scmp.le.s32.totalorder 1, %s24
      %p300 = scmp.lt.s32.totalorder %s24, 5
      %p301 = pnand %p299, %p300
      %p302 = pneg %p301
      // Predicated region
      $region9: #{tpu_custom_call.1} parent=5 // pred_check
        _
      $region10: #{tpu_custom_call.1} parent=5 // pred_check_branch
        %304 = sbr.rel (%p301) target = $region12
      $region11: #{tpu_custom_call.1} parent=5 // pred_region
        %s305 = ssub.s32 %s24, 1
        // Predicated region
        $region13: #{tpu_custom_call.1} parent=11 // pred_check
          %p306 = pneg %p265
        $region14: #{tpu_custom_call.1} parent=11 // pred_check_branch
          %308 = sbr.rel (%p306) target = $region16
        $region15: #{tpu_custom_call.1} parent=11 // pred_region
          %310 = vsyncadd [#allocation7], 0
          %s312 = sshll.u32 %s8, 4
          %s313 = int_to_ptr.hbm [resolvable:$true] %s312
          %s314 = sshll.u32 [#allocation8], 4
          %s315 = int_to_ptr.vmem [resolvable:$true] %s314
          %317 = dma.hbm_to_vmem [thread:$0]  %s313, 32, %s315, [#allocation7]
        $region16: #{tpu_custom_call.1} parent=11 // pred_fallthru
          _
      $region12: #{tpu_custom_call.1} parent=5 // pred_fallthru
        _
      %p318 = scmp.lt.s32.totalorder %s24, 4
      // Predicated region
      $region17: #{tpu_custom_call.1} parent=5 // pred_check
        %p319 = pneg %p318
      $region18: #{tpu_custom_call.1} parent=5 // pred_check_branch
        %321 = sbr.rel (%p319) target = $region20
      $region19: #{tpu_custom_call.1} parent=5 // pred_region
        // Predicated region
        $region21: #{tpu_custom_call.1} parent=19 // pred_check
          %p322 = pneg %p56
        $region22: #{tpu_custom_call.1} parent=19 // pred_check_branch
          %324 = sbr.rel (%p322) target = $region24
        $region23: #{tpu_custom_call.1} parent=19 // pred_region
          %s325 = smul.u32 2, %s31
          %p326 = scmp.lt.s32.totalorder %s325, 3
          %s327 = scalar_select %p326, %s325, 3
          %s328 = smul.addr %s327, 8
          %s329 = scalar_lea.vmem %s0, %s328
          %s330 = smul.u32 2, %s31
        $region24: #{tpu_custom_call.1} parent=19 // pred_fallthru
          _
        // Predicated region
        $region25: #{tpu_custom_call.1} parent=19 // pred_check
          %p331 = pneg %p82
        $region26: #{tpu_custom_call.1} parent=19 // pred_check_branch
          %333 = sbr.rel (%p331) target = $region28
        $region27: #{tpu_custom_call.1} parent=19 // pred_region
          %p334 = scmp.lt.s32.totalorder %s32, 1
          %s335 = scalar_select %p334, %s32, 1
          %s336 = smul.addr %s335, 8
          %s337 = scalar_lea.vmem %s1, %s336
        $region28: #{tpu_custom_call.1} parent=19 // pred_fallthru
          _
        // Predicated region
        $region29: #{tpu_custom_call.1} parent=19 // pred_check
          %p338 = pneg %p108
        $region30: #{tpu_custom_call.1} parent=19 // pred_check_branch
          %340 = sbr.rel (%p338) target = $region32
        $region31: #{tpu_custom_call.1} parent=19 // pred_region
          %p341 = scmp.lt.s32.totalorder %s32, 1
          %s342 = scalar_select %p341, %s32, 1
          %s343 = scalar_lea.vmem %s2, %s342
        $region32: #{tpu_custom_call.1} parent=19 // pred_fallthru
          _
        // Predicated region
        $region33: #{tpu_custom_call.1} parent=19 // pred_check
          %p344 = pneg %p134
        $region34: #{tpu_custom_call.1} parent=19 // pred_check_branch
          %346 = sbr.rel (%p344) target = $region36
        $region35: #{tpu_custom_call.1} parent=19 // pred_region
          %s347 = sand.u32 %s124, 1
          %s348 = scalar_lea.sflag [#allocation4], %s347
          %s349 = sand.u32 %s124, 1
          %s350 = scalar_lea.vmem [#allocation3], %s349
          %352 = vsyncadd %s348, 0
          %s353 = scalar_lea.hbm %s3, %s32
          %s355 = sshll.u32 %s353, 4
          %s356 = int_to_ptr.hbm [resolvable:$true] %s355
          %s357 = sshll.u32 %s350, 4
          %s358 = int_to_ptr.vmem [resolvable:$true] %s357
          %360 = dma.hbm_to_vmem [thread:$0]  %s356, 16, %s358, %s348
        $region36: #{tpu_custom_call.1} parent=19 // pred_fallthru
          _
        // Predicated region
        $region37: #{tpu_custom_call.1} parent=19 // pred_check
          %p361 = pneg %p160
        $region38: #{tpu_custom_call.1} parent=19 // pred_check_branch
          %363 = sbr.rel (%p361) target = $region40
        $region39: #{tpu_custom_call.1} parent=19 // pred_region
          %p364 = scmp.lt.s32.totalorder %s32, 1
          %s365 = scalar_select %p364, %s32, 1
          %s366 = smul.addr %s365, 4
          %s367 = smul.addr %s366, 4
          %s368 = scalar_lea.vmem %s4, %s367
        $region40: #{tpu_custom_call.1} parent=19 // pred_fallthru
          _
        // Predicated region
        $region41: #{tpu_custom_call.1} parent=19 // pred_check
          %p369 = pneg %p186
        $region42: #{tpu_custom_call.1} parent=19 // pred_check_branch
          %371 = sbr.rel (%p369) target = $region44
        $region43: #{tpu_custom_call.1} parent=19 // pred_region
          %p372 = scmp.lt.s32.totalorder %s32, 1
          %s373 = scalar_select %p372, %s32, 1
          %s374 = smul.addr %s373, 4
          %s375 = smul.addr %s374, 4
          %s376 = scalar_lea.vmem %s5, %s375
        $region44: #{tpu_custom_call.1} parent=19 // pred_fallthru
          _
        // Predicated region
        $region45: #{tpu_custom_call.1} parent=19 // pred_check
          %p377 = pneg %p212
        $region46: #{tpu_custom_call.1} parent=19 // pred_check_branch
          %379 = sbr.rel (%p377) target = $region48
        $region47: #{tpu_custom_call.1} parent=19 // pred_region
          %s380 = sand.u32 %s24, 1
          %s381 = scalar_lea.sflag [#allocation7], %s380
          %s382 = sand.u32 %s202, 1
          %s383 = smul.addr %s382, 16
          %s384 = scalar_lea.vmem [#allocation6], %s383
          %386 = vsyncadd %s381, 0
          %s387 = smul.addr %s32, 4
          %s388 = smul.addr %s387, 4
          %s389 = scalar_lea.hbm %s6, %s388
          %s390 = sshll.u32 %s389, 4
          %s391 = int_to_ptr.hbm [resolvable:$true] %s390
          %s392 = sshll.u32 %s384, 4
          %s393 = int_to_ptr.vmem [resolvable:$true] %s392
          %398 = dma.hbm_to_vmem [thread:$0]  %s391, 256, %s393, %s381, 64, 64, 4
        $region48: #{tpu_custom_call.1} parent=19 // pred_fallthru
          _
        // Predicated region
        $region49: #{tpu_custom_call.1} parent=19 // pred_check
          %p399 = pneg %p238
        $region50: #{tpu_custom_call.1} parent=19 // pred_check_branch
          %401 = sbr.rel (%p399) target = $region52
        $region51: #{tpu_custom_call.1} parent=19 // pred_region
          %p402 = scmp.lt.s32.totalorder %s32, 1
          %s403 = scalar_select %p402, %s32, 1
          %s404 = smul.addr %s403, 8
          %s405 = smul.addr %s404, 4
          %s406 = scalar_lea.vmem %s7, %s405
        $region52: #{tpu_custom_call.1} parent=19 // pred_fallthru
          _
      $region20: #{tpu_custom_call.1} parent=5 // pred_fallthru
        _
      %p407 = scmp.le.s32.totalorder 1, %s24
      %p408 = scmp.lt.s32.totalorder %s24, 5
      %p409 = pnand %p407, %p408
      %p410 = pneg %p409
      // Predicated region
      $region53: #{tpu_custom_call.1} parent=5 // pred_check
        _
      $region54: #{tpu_custom_call.1} parent=5 // pred_check_branch
        %412 = sbr.rel (%p409) target = $region56
      $region55: #{tpu_custom_call.1} parent=5 // pred_region
        %s413 = ssub.s32 %s24, 1
        %s414 = sand.u32 %s127, 1
        %s415 = scalar_lea.sflag [#allocation4], %s414
        %s416 = sand.u32 %s127, 1
        %s417 = scalar_lea.vmem [#allocation3], %s416
        // Predicated region
        $region57: #{tpu_custom_call.1} parent=55 // pred_check
          %p418 = pneg %p140
        $region58: #{tpu_custom_call.1} parent=55 // pred_check_branch
          %420 = sbr.rel (%p418) target = $region60
        $region59: #{tpu_custom_call.1} parent=55 // pred_region
          %422 = dma.done %s415, 16
        $region60: #{tpu_custom_call.1} parent=55 // pred_fallthru
          _
        %s423 = sand.u32 %s29, 1
        %s424 = scalar_lea.sflag [#allocation7], %s423
        %s425 = sand.u32 %s205, 1
        %s426 = smul.addr %s425, 16
        %s427 = scalar_lea.vmem [#allocation6], %s426
        // Predicated region
        $region61: #{tpu_custom_call.1} parent=55 // pred_check
          %p428 = pneg %p218
        $region62: #{tpu_custom_call.1} parent=55 // pred_check_branch
          %430 = sbr.rel (%p428) target = $region64
        $region63: #{tpu_custom_call.1} parent=55 // pred_region
          %432 = dma.done %s424, 256
        $region64: #{tpu_custom_call.1} parent=55 // pred_fallthru
          _
        // Predicated region
        $region65: #{tpu_custom_call.1} parent=55 // pred_check
          %p433 = pneg %p265
        $region66: #{tpu_custom_call.1} parent=55 // pred_check_branch
          %435 = sbr.rel (%p433) target = $region68
        $region67: #{tpu_custom_call.1} parent=55 // pred_region
          %437 = dma.done [#allocation7], 32
        $region68: #{tpu_custom_call.1} parent=55 // pred_fallthru
          _
        %s438 = smul.u32 2, %s33
        %p439 = scmp.lt.s32.totalorder %s438, 3
        %s440 = scalar_select %p439, %s438, 3
        %s441 = smul.addr %s440, 8
        %s442 = scalar_lea.vmem %s0, %s441
        %p443 = pneg %p62
        %p444 = pneg %p59
        %p445 = scmp.lt.s32.totalorder %s34, 1
        %s446 = scalar_select %p445, %s34, 1
        %s447 = smul.addr %s446, 8
        %s448 = scalar_lea.vmem %s1, %s447
        %p449 = pneg %p88
        %p450 = pneg %p85
        %p451 = scmp.lt.s32.totalorder %s34, 1
        %s452 = scalar_select %p451, %s34, 1
        %s453 = scalar_lea.vmem %s2, %s452
        %p454 = pneg %p114
        %p455 = pneg %p111
        %s456 = sand.u32 %s127, 1
        %s457 = scalar_lea.sflag [#allocation4], %s456
        %s458 = sand.u32 %s127, 1
        %s459 = scalar_lea.vmem [#allocation3], %s458
        %p460 = pneg %p140
        %p461 = pneg %p137
        %p462 = scmp.lt.s32.totalorder %s34, 1
        %s463 = scalar_select %p462, %s34, 1
        %s464 = smul.addr %s463, 4
        %s465 = smul.addr %s464, 4
        %s466 = scalar_lea.vmem %s4, %s465
        %p467 = pneg %p166
        %p468 = pneg %p163
        %p469 = scmp.lt.s32.totalorder %s34, 1
        %s470 = scalar_select %p469, %s34, 1
        %s471 = smul.addr %s470, 4
        %s472 = smul.addr %s471, 4
        %s473 = scalar_lea.vmem %s5, %s472
        %p474 = pneg %p192
        %p475 = pneg %p189
        %s476 = sand.u32 %s29, 1
        %s477 = scalar_lea.sflag [#allocation7], %s476
        %s478 = sand.u32 %s205, 1
        %s479 = smul.addr %s478, 16
        %s480 = scalar_lea.vmem [#allocation6], %s479
        %p481 = pneg %p218
        %p482 = pneg %p215
        %p483 = scmp.lt.s32.totalorder %s34, 1
        %s484 = scalar_select %p483, %s34, 1
        %s485 = smul.addr %s484, 8
        %s486 = smul.addr %s485, 4
        %s487 = scalar_lea.vmem %s7, %s486
        %p488 = pneg %p244
        %p489 = pneg %p241
        %p490 = pneg %p265
        %p491 = pneg %p262
        %p492 = pneg %p291
        %p493 = pneg %p288
        %s494 = sand.u32 %s278, 1
        %s495 = scalar_lea.sflag [#allocation5], %s494
        %s496 = sand.u32 %s278, 1
        %s497 = smul.addr %s496, 16
        %s498 = scalar_lea.vmem [#allocation9], %s497
        %s499 = smul.u32 2, %s33
        %p500 = scmp.lt.s32.totalorder %s499, 3
        %s501 = scalar_select %p500, %s499, 3
        %s502 = smul.addr %s501, 8
        %s503 = scalar_lea.vmem %s0, %s502
        %s504 = smul.u32 2, %s33
        %p505 = scmp.lt.s32.totalorder %s34, 1
        %s506 = scalar_select %p505, %s34, 1
        %s507 = smul.addr %s506, 8
        %s508 = scalar_lea.vmem %s1, %s507
        %p509 = scmp.lt.s32.totalorder %s34, 1
        %s510 = scalar_select %p509, %s34, 1
        %s511 = scalar_lea.vmem %s2, %s510
        %p512 = scmp.lt.s32.totalorder %s34, 1
        %s513 = scalar_select %p512, %s34, 1
        %s514 = smul.addr %s513, 4
        %s515 = smul.addr %s514, 4
        %s516 = scalar_lea.vmem %s4, %s515
        %p517 = scmp.lt.s32.totalorder %s34, 1
        %s518 = scalar_select %p517, %s34, 1
        %s519 = smul.addr %s518, 4
        %s520 = smul.addr %s519, 4
        %s521 = scalar_lea.vmem %s5, %s520
        %p522 = scmp.lt.s32.totalorder %s34, 1
        %s523 = scalar_select %p522, %s34, 1
        %s524 = smul.addr %s523, 8
        %s525 = smul.addr %s524, 4
        %s526 = scalar_lea.vmem %s7, %s525
        %s527 = smul.u32 2, %s33
        %p529 = scmp.eq.s32.totalorder %s34, 0
        // Predicated region
        $region69: #{tpu_custom_call.1} parent=55 // pred_check
          %p530 = pneg %p529
        $region70: #{tpu_custom_call.1} parent=55 // pred_check_branch
          %532 = sbr.rel (%p530) target = $region72
        $region71: #{tpu_custom_call.1} parent=55 // pred_region
          %v533 = vld [vmem:[%s503] sm:$0xff]
          %v534 = vld [vmem:[%s503 + $0x8] sm:$0xff]
          %vm535 = vcmask 261120
          %536 = vst.msk [vmem:[#allocation2] sm:$0xff] %vm535, %v533
          %537 = vst.msk [vmem:[#allocation2 + $0x8] sm:$0xff] %vm535, %v534
        $region72: #{tpu_custom_call.1} parent=55 // pred_fallthru
          _
        %v538 = vld [vmem:[#allocation2] sm:$0xff]
        %v539 = vld [vmem:[#allocation2 + $0x8] sm:$0xff]
        %v540 = vld [vmem:[%s508] sm:$0x3f]
        %v541 = vld [vmem:[%s511] sm:$0x1]
        %v542 = vld [vmem:[%s417] sm:$0x1]
        %vm543 = vcmask 261120
        %v544 = vsel %vm543, %v538, 0.0
        %545 = vadd.xlane.f32.xlu0 %v544
        %v546 = vpop.xlane.xlu0 %545
        %v547 = vsel %vm543, %v539, 0.0
        %548 = vadd.xlane.f32.xlu0 %v547
        %v549 = vpop.xlane.xlu0 %548
        %v550 = vrcp.pop 32.0
        %v551 = vmul.f32 32.0, %v550
        %v552 = vsub.f32 1.0, %v551
        %v553 = vmul.f32 %v550, %v552
        %v554 = vadd.f32 %v550, %v553
        %vm555 = vweird.f32 %v550
        %v556 = vsel %vm555, %v550, %v554
        %v557 = vmul.f32 %v546, %v556
        %v558 = vmul.f32 %v549, %v556
        %v559 = vsub.f32 %v538, %v557
        %v560 = vsub.f32 %v539, %v558
        %v561 = vmul.f32 %v559, %v559
        %v562 = vmul.f32 %v560, %v560
        %v563 = vsel %vm543, %v561, 0.0
        %564 = vadd.xlane.f32.xlu0 %v563
        %v565 = vpop.xlane.xlu0 %564
        %v566 = vsel %vm543, %v562, 0.0
        %567 = vadd.xlane.f32.xlu0 %v566
        %v568 = vpop.xlane.xlu0 %567
        %v569 = vmul.f32 %v565, %v556
        %v570 = vmul.f32 %v568, %v556
        %v571 = vadd.f32 %v569, 1e-06
        %v572 = vadd.f32 %v570, 1e-06
        %v573 = vrsqrt.pop %v571
        %v574 = vmul.f32 %v573, %v571
        %v575 = vmul.f32 %v574, %v573
        %v576 = vmul.f32 0.5, %v575
        %v577 = vsub.f32 1.5, %v576
        %v578 = vmul.f32 %v573, %v577
        %vm579 = vweird.f32 %v571
        %vm580 = vweird.f32 %v573
        %vm581 = vmor %vm579, %vm580
        %v582 = vsel %vm581, %v573, %v578
        %v583 = vrsqrt.pop %v572
        %v584 = vmul.f32 %v583, %v572
        %v585 = vmul.f32 %v584, %v583
        %v586 = vmul.f32 0.5, %v585
        %v587 = vsub.f32 1.5, %v586
        %v588 = vmul.f32 %v583, %v587
        %vm589 = vweird.f32 %v572
        %vm590 = vweird.f32 %v583
        %vm591 = vmor %vm589, %vm590
        %v592 = vsel %vm591, %v583, %v588
        %v593 = vmul.f32 %v559, %v582
        %v594 = vmul.f32 %v560, %v592
        %v595 = vperm.slane %v540, 0
        %v596 = vmul.f32 %v593, %v595
        %v597 = vmul.f32 %v594, %v595
        %v598 = vperm.slane %v540, 1
        %v599 = vadd.f32 %v596, %v598
        %v600 = vadd.f32 %v597, %v598
        %v601 = vpack.c.bf16 %v600, %v599
        %v602 = vld [vmem:[%s516] sm:$0xf]
        %v603 = vld [vmem:[%s516 + $0x4] sm:$0xf]
        %v604 = vld [vmem:[%s516 + $0x8] sm:$0xf]
        %v605 = vld [vmem:[%s516 + $0xc] sm:$0xf]
        %v607 = vperm.slane %v541, 0
        %v613 = vunpack.c.l.b16 %v602
        %v614 = vunpack.c.l.b16 %v603
        %v615 = vunpack.c.l.b16 %v604
        %v616 = vunpack.c.l.b16 %v605
        %v617 = vpack.c.b16 %v614, %v613
        %v618 = vpack.c.b16 %v616, %v615
        %v622 = vsel %vm543, %v601, 0
        %624 = vmatpush.bf16.msra.mxu0 0
        %625 = vmatpush.bf16.msra.mxu0 0
        %626 = vmatpush.bf16.msra.mxu0 0
        %627 = vmatpush.bf16.msra.mxu0 0
        %628 = vmatpush.bf16.msra.mxu0 0
        %629 = vmatpush.bf16.msra.mxu0 0
        %630 = vmatpush.bf16.msra.mxu0 %v618
        %631 = vmatpush.bf16.msra.mxu0 %v617
        %632 = vmatmul.bf16.gmra.mxu0 %v622
        %v633 = vpop.f32.mrf.mxu0
        %v634 = vadd.f32 %v607, %v633
        %v635 = vpop.f32.mrf.mxu0
        %v636 = vadd.f32 %v607, %v635
        %637 = vdwg.mxu0
        %639 = vrot.lane.b32.xlu0 %v634, 120
        %v640 = vpop.permute.xlu0 %639
        %642 = vrot.lane.b32.xlu0 %v634, 112
        %v643 = vpop.permute.xlu0 %642
        %645 = vrot.lane.b32.xlu0 %v634, 104
        %v646 = vpop.permute.xlu0 %645
        %v648 = vrot.slane %v643, 4
        %vm649 = vcmask 1047556
        %v650 = vsel %vm649, %v648, %v634
        %v651 = vrot.slane %v634, 4
        %v652 = vsel %vm649, %v643, %v651
        %v654 = vunpack.c.l.s4 1983009808
        %v655 = vunpack.c.0.s8 %v654
        %v656 = vperm.slane %v650, %v655
        %v658 = vunpack.c.l.s4 1983009808
        %v659 = vunpack.c.0.s8 %v658
        %v660 = vperm.slane %v652, %v659
        %v661 = vrot.slane %v646, 4
        %v662 = vsel %vm649, %v661, %v640
        %v663 = vrot.slane %v640, 4
        %v664 = vsel %vm649, %v646, %v663
        %v666 = vunpack.c.l.s4 1983009808
        %v667 = vunpack.c.0.s8 %v666
        %v668 = vperm.slane %v662, %v667
        %v670 = vunpack.c.l.s4 1983009808
        %v671 = vunpack.c.0.s8 %v670
        %v672 = vperm.slane %v664, %v671
        %v673 = vrot.slane %v668, 4
        %v674 = vsel %vm649, %v673, %v656
        %v675 = vrot.slane %v656, 4
        %v676 = vsel %vm649, %v668, %v675
        %v678 = vunpack.c.l.s4 1934713408
        %v679 = vunpack.c.0.s8 %v678
        %v680 = vperm.slane %v674, %v679
        %v682 = vunpack.c.l.s4 1934713408
        %v683 = vunpack.c.0.s8 %v682
        %v684 = vperm.slane %v676, %v683
        %v685 = vrot.slane %v672, 4
        %v686 = vsel %vm649, %v685, %v660
        %v687 = vrot.slane %v660, 4
        %v688 = vsel %vm649, %v672, %v687
        %v690 = vunpack.c.l.s4 1934713408
        %v691 = vunpack.c.0.s8 %v690
        %v692 = vperm.slane %v686, %v691
        %v694 = vunpack.c.l.s4 1934713408
        %v695 = vunpack.c.0.s8 %v694
        %v696 = vperm.slane %v688, %v695
        %v697 = vrot.slane %v680, 4
        %v698 = vsel %vm649, 0.0, %v697
        %v699 = vrot.slane %v684, 4
        %v700 = vsel %vm649, 0.0, %v699
        %v701 = vrot.slane %v692, 4
        %v702 = vsel %vm649, 0.0, %v701
        %v703 = vrot.slane %v696, 4
        %v704 = vsel %vm649, 0.0, %v703
        %v705 = vsel %vm649, %v699, %v680
        %v707 = vunpack.c.l.s4 1983009808
        %v708 = vunpack.c.0.s8 %v707
        %v709 = vperm.slane %v705, %v708
        %v710 = vrot.slane %v700, 4
        %v711 = vsel %vm649, %v710, %v698
        %v713 = vunpack.c.l.s4 1983009808
        %v714 = vunpack.c.0.s8 %v713
        %v715 = vperm.slane %v711, %v714
        %v716 = vsel %vm649, %v703, %v692
        %v718 = vunpack.c.l.s4 1983009808
        %v719 = vunpack.c.0.s8 %v718
        %v720 = vperm.slane %v716, %v719
        %v721 = vrot.slane %v704, 4
        %v722 = vsel %vm649, %v721, %v702
        %v724 = vunpack.c.l.s4 1983009808
        %v725 = vunpack.c.0.s8 %v724
        %v726 = vperm.slane %v722, %v725
        %v727 = vrot.slane %v715, 4
        %v728 = vsel %vm649, %v727, %v709
        %v729 = vrot.slane %v709, 4
        %v730 = vsel %vm649, %v715, %v729
        %v732 = vunpack.c.l.s4 1934713408
        %v733 = vunpack.c.0.s8 %v732
        %v734 = vperm.slane %v728, %v733
        %v736 = vunpack.c.l.s4 1934713408
        %v737 = vunpack.c.0.s8 %v736
        %v738 = vperm.slane %v730, %v737
        %v739 = vrot.slane %v726, 4
        %v740 = vsel %vm649, %v739, %v720
        %v741 = vrot.slane %v720, 4
        %v742 = vsel %vm649, %v726, %v741
        %v744 = vunpack.c.l.s4 1934713408
        %v745 = vunpack.c.0.s8 %v744
        %v746 = vperm.slane %v740, %v745
        %v748 = vunpack.c.l.s4 1934713408
        %v749 = vunpack.c.0.s8 %v748
        %v750 = vperm.slane %v742, %v749
        %v751 = vrot.slane %v746, 4
        %v752 = vsel %vm649, %v751, %v734
        %v753 = vrot.slane %v734, 4
        %v754 = vsel %vm649, %v746, %v753
        %v755 = vrot.slane %v750, 4
        %v756 = vsel %vm649, %v755, %v738
        %v757 = vrot.slane %v738, 4
        %v758 = vsel %vm649, %v750, %v757
        %v759 = vpack.c.bf16 %v752, %v752
        %v760 = vpack.c.bf16 %v754, %v754
        %v761 = vpack.c.bf16 %v756, %v756
        %v762 = vpack.c.bf16 %v758, %v758
        %763 = vrot.lane.b32.xlu0 %v634, 96
        %v764 = vpop.permute.xlu0 %763
        %765 = vrot.lane.b32.xlu0 %v640, 96
        %v766 = vpop.permute.xlu0 %765
        %767 = vrot.lane.b32.xlu0 %v643, 96
        %v768 = vpop.permute.xlu0 %767
        %769 = vrot.lane.b32.xlu0 %v646, 96
        %v770 = vpop.permute.xlu0 %769
        %v775 = vrot.slane %v768, 4
        %v776 = vsel %vm649, %v775, %v764
        %v777 = vrot.slane %v764, 4
        %v778 = vsel %vm649, %v768, %v777
        %v780 = vunpack.c.l.s4 1983009808
        %v781 = vunpack.c.0.s8 %v780
        %v782 = vperm.slane %v776, %v781
        %v784 = vunpack.c.l.s4 1983009808
        %v785 = vunpack.c.0.s8 %v784
        %v786 = vperm.slane %v778, %v785
        %v787 = vrot.slane %v770, 4
        %v788 = vsel %vm649, %v787, %v766
        %v789 = vrot.slane %v766, 4
        %v790 = vsel %vm649, %v770, %v789
        %v792 = vunpack.c.l.s4 1983009808
        %v793 = vunpack.c.0.s8 %v792
        %v794 = vperm.slane %v788, %v793
        %v796 = vunpack.c.l.s4 1983009808
        %v797 = vunpack.c.0.s8 %v796
        %v798 = vperm.slane %v790, %v797
        %v799 = vrot.slane %v794, 4
        %v800 = vsel %vm649, %v799, %v782
        %v801 = vrot.slane %v782, 4
        %v802 = vsel %vm649, %v794, %v801
        %v804 = vunpack.c.l.s4 1934713408
        %v805 = vunpack.c.0.s8 %v804
        %v806 = vperm.slane %v800, %v805
        %v808 = vunpack.c.l.s4 1934713408
        %v809 = vunpack.c.0.s8 %v808
        %v810 = vperm.slane %v802, %v809
        %v811 = vrot.slane %v798, 4
        %v812 = vsel %vm649, %v811, %v786
        %v813 = vrot.slane %v786, 4
        %v814 = vsel %vm649, %v798, %v813
        %v816 = vunpack.c.l.s4 1934713408
        %v817 = vunpack.c.0.s8 %v816
        %v818 = vperm.slane %v812, %v817
        %v820 = vunpack.c.l.s4 1934713408
        %v821 = vunpack.c.0.s8 %v820
        %v822 = vperm.slane %v814, %v821
        %v823 = vrot.slane %v806, 4
        %v824 = vsel %vm649, 0.0, %v823
        %v825 = vrot.slane %v810, 4
        %v826 = vsel %vm649, 0.0, %v825
        %v827 = vrot.slane %v818, 4
        %v828 = vsel %vm649, 0.0, %v827
        %v829 = vrot.slane %v822, 4
        %v830 = vsel %vm649, 0.0, %v829
        %v831 = vsel %vm649, %v825, %v806
        %v833 = vunpack.c.l.s4 1983009808
        %v834 = vunpack.c.0.s8 %v833
        %v835 = vperm.slane %v831, %v834
        %v836 = vrot.slane %v826, 4
        %v837 = vsel %vm649, %v836, %v824
        %v839 = vunpack.c.l.s4 1983009808
        %v840 = vunpack.c.0.s8 %v839
        %v841 = vperm.slane %v837, %v840
        %v842 = vsel %vm649, %v829, %v818
        %v844 = vunpack.c.l.s4 1983009808
        %v845 = vunpack.c.0.s8 %v844
        %v846 = vperm.slane %v842, %v845
        %v847 = vrot.slane %v830, 4
        %v848 = vsel %vm649, %v847, %v828
        %v850 = vunpack.c.l.s4 1983009808
        %v851 = vunpack.c.0.s8 %v850
        %v852 = vperm.slane %v848, %v851
        %v853 = vrot.slane %v841, 4
        %v854 = vsel %vm649, %v853, %v835
        %v855 = vrot.slane %v835, 4
        %v856 = vsel %vm649, %v841, %v855
        %v858 = vunpack.c.l.s4 1934713408
        %v859 = vunpack.c.0.s8 %v858
        %v860 = vperm.slane %v854, %v859
        %v862 = vunpack.c.l.s4 1934713408
        %v863 = vunpack.c.0.s8 %v862
        %v864 = vperm.slane %v856, %v863
        %v865 = vrot.slane %v852, 4
        %v866 = vsel %vm649, %v865, %v846
        %v867 = vrot.slane %v846, 4
        %v868 = vsel %vm649, %v852, %v867
        %v870 = vunpack.c.l.s4 1934713408
        %v871 = vunpack.c.0.s8 %v870
        %v872 = vperm.slane %v866, %v871
        %v874 = vunpack.c.l.s4 1934713408
        %v875 = vunpack.c.0.s8 %v874
        %v876 = vperm.slane %v868, %v875
        %v877 = vrot.slane %v872, 4
        %v878 = vsel %vm649, %v877, %v860
        %v879 = vrot.slane %v860, 4
        %v880 = vsel %vm649, %v872, %v879
        %v881 = vrot.slane %v876, 4
        %v882 = vsel %vm649, %v881, %v864
        %v883 = vrot.slane %v864, 4
        %v884 = vsel %vm649, %v876, %v883
        %v885 = vpack.c.bf16 %v878, %v878
        %v886 = vpack.c.bf16 %v880, %v880
        %v887 = vpack.c.bf16 %v882, %v882
        %v888 = vpack.c.bf16 %v884, %v884
        %889 = vrot.lane.b32.xlu0 %v634, 64
        %v890 = vpop.permute.xlu0 %889
        %891 = vrot.lane.b32.xlu0 %v640, 64
        %v892 = vpop.permute.xlu0 %891
        %893 = vrot.lane.b32.xlu0 %v643, 64
        %v894 = vpop.permute.xlu0 %893
        %895 = vrot.lane.b32.xlu0 %v646, 64
        %v896 = vpop.permute.xlu0 %895
        %v901 = vrot.slane %v894, 4
        %v902 = vsel %vm649, %v901, %v890
        %v903 = vrot.slane %v890, 4
        %v904 = vsel %vm649, %v894, %v903
        %v906 = vunpack.c.l.s4 1983009808
        %v907 = vunpack.c.0.s8 %v906
        %v908 = vperm.slane %v902, %v907
        %v910 = vunpack.c.l.s4 1983009808
        %v911 = vunpack.c.0.s8 %v910
        %v912 = vperm.slane %v904, %v911
        %v913 = vrot.slane %v896, 4
        %v914 = vsel %vm649, %v913, %v892
        %v915 = vrot.slane %v892, 4
        %v916 = vsel %vm649, %v896, %v915
        %v918 = vunpack.c.l.s4 1983009808
        %v919 = vunpack.c.0.s8 %v918
        %v920 = vperm.slane %v914, %v919
        %v922 = vunpack.c.l.s4 1983009808
        %v923 = vunpack.c.0.s8 %v922
        %v924 = vperm.slane %v916, %v923
        %v925 = vrot.slane %v920, 4
        %v926 = vsel %vm649, %v925, %v908
        %v927 = vrot.slane %v908, 4
        %v928 = vsel %vm649, %v920, %v927
        %v930 = vunpack.c.l.s4 1934713408
        %v931 = vunpack.c.0.s8 %v930
        %v932 = vperm.slane %v926, %v931
        %v934 = vunpack.c.l.s4 1934713408
        %v935 = vunpack.c.0.s8 %v934
        %v936 = vperm.slane %v928, %v935
        %v937 = vrot.slane %v924, 4
        %v938 = vsel %vm649, %v937, %v912
        %v939 = vrot.slane %v912, 4
        %v940 = vsel %vm649, %v924, %v939
        %v942 = vunpack.c.l.s4 1934713408
        %v943 = vunpack.c.0.s8 %v942
        %v944 = vperm.slane %v938, %v943
        %v946 = vunpack.c.l.s4 1934713408
        %v947 = vunpack.c.0.s8 %v946
        %v948 = vperm.slane %v940, %v947
        %v949 = vrot.slane %v932, 4
        %v950 = vsel %vm649, 0.0, %v949
        %v951 = vrot.slane %v936, 4
        %v952 = vsel %vm649, 0.0, %v951
        %v953 = vrot.slane %v944, 4
        %v954 = vsel %vm649, 0.0, %v953
        %v955 = vrot.slane %v948, 4
        %v956 = vsel %vm649, 0.0, %v955
        %v957 = vsel %vm649, %v951, %v932
        %v959 = vunpack.c.l.s4 1983009808
        %v960 = vunpack.c.0.s8 %v959
        %v961 = vperm.slane %v957, %v960
        %v962 = vrot.slane %v952, 4
        %v963 = vsel %vm649, %v962, %v950
        %v965 = vunpack.c.l.s4 1983009808
        %v966 = vunpack.c.0.s8 %v965
        %v967 = vperm.slane %v963, %v966
        %v968 = vsel %vm649, %v955, %v944
        %v970 = vunpack.c.l.s4 1983009808
        %v971 = vunpack.c.0.s8 %v970
        %v972 = vperm.slane %v968, %v971
        %v973 = vrot.slane %v956, 4
        %v974 = vsel %vm649, %v973, %v954
        %v976 = vunpack.c.l.s4 1983009808
        %v977 = vunpack.c.0.s8 %v976
        %v978 = vperm.slane %v974, %v977
        %v979 = vrot.slane %v967, 4
        %v980 = vsel %vm649, %v979, %v961
        %v981 = vrot.slane %v961, 4
        %v982 = vsel %vm649, %v967, %v981
        %v984 = vunpack.c.l.s4 1934713408
        %v985 = vunpack.c.0.s8 %v984
        %v986 = vperm.slane %v980, %v985
        %v988 = vunpack.c.l.s4 1934713408
        %v989 = vunpack.c.0.s8 %v988
        %v990 = vperm.slane %v982, %v989
        %v991 = vrot.slane %v978, 4
        %v992 = vsel %vm649, %v991, %v972
        %v993 = vrot.slane %v972, 4
        %v994 = vsel %vm649, %v978, %v993
        %v996 = vunpack.c.l.s4 1934713408
        %v997 = vunpack.c.0.s8 %v996
        %v998 = vperm.slane %v992, %v997
        %v1000 = vunpack.c.l.s4 1934713408
        %v1001 = vunpack.c.0.s8 %v1000
        %v1002 = vperm.slane %v994, %v1001
        %v1003 = vrot.slane %v998, 4
        %v1004 = vsel %vm649, %v1003, %v986
        %v1005 = vrot.slane %v986, 4
        %v1006 = vsel %vm649, %v998, %v1005
        %v1007 = vrot.slane %v1002, 4
        %v1008 = vsel %vm649, %v1007, %v990
        %v1009 = vrot.slane %v990, 4
        %v1010 = vsel %vm649, %v1002, %v1009
        %v1011 = vpack.c.bf16 %v1004, %v1004
        %v1012 = vpack.c.bf16 %v1006, %v1006
        %v1013 = vpack.c.bf16 %v1008, %v1008
        %v1014 = vpack.c.bf16 %v1010, %v1010
        %vm1015 = vcmask 64512
        %v1017 = vsel %vm1015, %v759, 0
        %v1020 = vsel %vm1015, %v885, 0
        %1022 = vmatpush.bf16.xpose.msra.mxu0 0
        %1023 = vmatpush.bf16.xpose.msra.mxu0 0
        %1024 = vmatpush.bf16.xpose.msra.mxu0 0
        %1025 = vmatpush.bf16.xpose.msra.mxu0 0
        %1026 = vmatpush.bf16.xpose.msra.mxu0 0
        %1027 = vmatpush.bf16.xpose.msra.mxu0 0
        %1028 = vmatpush.bf16.xpose.msra.mxu0 0
        %1029 = vmatpush.bf16.xpose.msra.mxu0 %v1020
        %1030 = vmatmul.bf16.gmra.mxu0 %v1017
        %v1031 = vpop.f32.mrf.mxu0
        %v1032 = vadd.f32 0.0, %v1031
        %v1033 = vpop.f32.mrf.mxu0
        %1034 = vdwg.mxu0
        %v1036 = vsel %vm1015, %v760, 0
        %v1039 = vsel %vm1015, %v886, 0
        %1041 = vmatpush.bf16.xpose.msra.mxu0 0
        %1042 = vmatpush.bf16.xpose.msra.mxu0 0
        %1043 = vmatpush.bf16.xpose.msra.mxu0 0
        %1044 = vmatpush.bf16.xpose.msra.mxu0 0
        %1045 = vmatpush.bf16.xpose.msra.mxu0 0
        %1046 = vmatpush.bf16.xpose.msra.mxu0 0
        %1047 = vmatpush.bf16.xpose.msra.mxu0 0
        %1048 = vmatpush.bf16.xpose.msra.mxu0 %v1039
        %1049 = vmatmul.bf16.gmra.mxu0 %v1036
        %v1050 = vpop.f32.mrf.mxu0
        %v1051 = vadd.f32 0.0, %v1050
        %v1052 = vpop.f32.mrf.mxu0
        %1053 = vdwg.mxu0
        %v1055 = vsel %vm1015, %v761, 0
        %v1058 = vsel %vm1015, %v887, 0
        %1060 = vmatpush.bf16.xpose.msra.mxu0 0
        %1061 = vmatpush.bf16.xpose.msra.mxu0 0
        %1062 = vmatpush.bf16.xpose.msra.mxu0 0
        %1063 = vmatpush.bf16.xpose.msra.mxu0 0
        %1064 = vmatpush.bf16.xpose.msra.mxu0 0
        %1065 = vmatpush.bf16.xpose.msra.mxu0 0
        %1066 = vmatpush.bf16.xpose.msra.mxu0 0
        %1067 = vmatpush.bf16.xpose.msra.mxu0 %v1058
        %1068 = vmatmul.bf16.gmra.mxu0 %v1055
        %v1069 = vpop.f32.mrf.mxu0
        %v1070 = vadd.f32 0.0, %v1069
        %v1071 = vpop.f32.mrf.mxu0
        %1072 = vdwg.mxu0
        %v1074 = vsel %vm1015, %v762, 0
        %v1077 = vsel %vm1015, %v888, 0
        %1079 = vmatpush.bf16.xpose.msra.mxu0 0
        %1080 = vmatpush.bf16.xpose.msra.mxu0 0
        %1081 = vmatpush.bf16.xpose.msra.mxu0 0
        %1082 = vmatpush.bf16.xpose.msra.mxu0 0
        %1083 = vmatpush.bf16.xpose.msra.mxu0 0
        %1084 = vmatpush.bf16.xpose.msra.mxu0 0
        %1085 = vmatpush.bf16.xpose.msra.mxu0 0
        %1086 = vmatpush.bf16.xpose.msra.mxu0 %v1077
        %1087 = vmatmul.bf16.gmra.mxu0 %v1074
        %v1088 = vpop.f32.mrf.mxu0
        %v1089 = vadd.f32 0.0, %v1088
        %v1090 = vpop.f32.mrf.mxu0
        %1091 = vdwg.mxu0
        %v1092 = vsel %vm1015, %v1032, -inf
        %1093 = vmax.xlane.f32.xlu0 %v1092
        %v1094 = vpop.xlane.xlu0 %1093
        %v1095 = vsel %vm1015, %v1051, -inf
        %1096 = vmax.xlane.f32.xlu0 %v1095
        %v1097 = vpop.xlane.xlu0 %1096
        %v1098 = vsel %vm1015, %v1070, -inf
        %1099 = vmax.xlane.f32.xlu0 %v1098
        %v1100 = vpop.xlane.xlu0 %1099
        %v1101 = vsel %vm1015, %v1089, -inf
        %1102 = vmax.xlane.f32.xlu0 %v1101
        %v1103 = vpop.xlane.xlu0 %1102
        %v1104 = vsub.f32 %v1032, %v1094
        %v1105 = vsub.f32 %v1051, %v1097
        %v1106 = vsub.f32 %v1070, %v1100
        %v1107 = vsub.f32 %v1089, %v1103
        %v1108 = vmul.f32 %v1104, 1.442695
        %v1109 = vpow.pop %v1108
        %v1110 = vmul.f32 %v1105, 1.442695
        %v1111 = vpow.pop %v1110
        %v1112 = vmul.f32 %v1106, 1.442695
        %v1113 = vpow.pop %v1112
        %v1114 = vmul.f32 %v1107, 1.442695
        %v1115 = vpow.pop %v1114
        %v1116 = vsel %vm1015, %v1109, 0.0
        %1117 = vadd.xlane.f32.xlu0 %v1116
        %v1118 = vpop.xlane.xlu0 %1117
        %v1119 = vsel %vm1015, %v1111, 0.0
        %1120 = vadd.xlane.f32.xlu0 %v1119
        %v1121 = vpop.xlane.xlu0 %1120
        %v1122 = vsel %vm1015, %v1113, 0.0
        %1123 = vadd.xlane.f32.xlu0 %v1122
        %v1124 = vpop.xlane.xlu0 %1123
        %v1125 = vsel %vm1015, %v1115, 0.0
        %1126 = vadd.xlane.f32.xlu0 %v1125
        %v1127 = vpop.xlane.xlu0 %1126
        %v1128 = vrcp.pop %v1118
        %v1129 = vmul.f32 %v1118, %v1128
        %v1130 = vsub.f32 1.0, %v1129
        %v1131 = vmul.f32 %v1128, %v1130
        %v1132 = vadd.f32 %v1128, %v1131
        %vm1133 = vweird.f32 %v1118
        %vm1134 = vweird.f32 %v1128
        %vm1135 = vmor %vm1133, %vm1134
        %v1136 = vsel %vm1135, %v1128, %v1132
        %v1137 = vand.u32 2147483647, %v1118
        %vm1138 = vcmp.eq.f32.partialorder %v1137, 8.507059e+37
        %v1139 = vand.u32 %v1118, 2147483648
        %v1140 = vor.u32 1.1754944e-38, %v1139
        %v1141 = vsel %vm1138, %v1140, %v1136
        %v1142 = vmul.f32 %v1109, %v1141
        %v1143 = vrcp.pop %v1121
        %v1144 = vmul.f32 %v1121, %v1143
        %v1145 = vsub.f32 1.0, %v1144
        %v1146 = vmul.f32 %v1143, %v1145
        %v1147 = vadd.f32 %v1143, %v1146
        %vm1148 = vweird.f32 %v1121
        %vm1149 = vweird.f32 %v1143
        %vm1150 = vmor %vm1148, %vm1149
        %v1151 = vsel %vm1150, %v1143, %v1147
        %v1152 = vand.u32 2147483647, %v1121
        %vm1153 = vcmp.eq.f32.partialorder %v1152, 8.507059e+37
        %v1154 = vand.u32 %v1121, 2147483648
        %v1155 = vor.u32 1.1754944e-38, %v1154
        %v1156 = vsel %vm1153, %v1155, %v1151
        %v1157 = vmul.f32 %v1111, %v1156
        %v1158 = vrcp.pop %v1124
        %v1159 = vmul.f32 %v1124, %v1158
        %v1160 = vsub.f32 1.0, %v1159
        %v1161 = vmul.f32 %v1158, %v1160
        %v1162 = vadd.f32 %v1158, %v1161
        %vm1163 = vweird.f32 %v1124
        %vm1164 = vweird.f32 %v1158
        %vm1165 = vmor %vm1163, %vm1164
        %v1166 = vsel %vm1165, %v1158, %v1162
        %v1167 = vand.u32 2147483647, %v1124
        %vm1168 = vcmp.eq.f32.partialorder %v1167, 8.507059e+37
        %v1169 = vand.u32 %v1124, 2147483648
        %v1170 = vor.u32 1.1754944e-38, %v1169
        %v1171 = vsel %vm1168, %v1170, %v1166
        %v1172 = vmul.f32 %v1113, %v1171
        %v1173 = vrcp.pop %v1127
        %v1174 = vmul.f32 %v1127, %v1173
        %v1175 = vsub.f32 1.0, %v1174
        %v1176 = vmul.f32 %v1173, %v1175
        %v1177 = vadd.f32 %v1173, %v1176
        %vm1178 = vweird.f32 %v1127
        %vm1179 = vweird.f32 %v1173
        %vm1180 = vmor %vm1178, %vm1179
        %v1181 = vsel %vm1180, %v1173, %v1177
        %v1182 = vand.u32 2147483647, %v1127
        %vm1183 = vcmp.eq.f32.partialorder %v1182, 8.507059e+37
        %v1184 = vand.u32 %v1127, 2147483648
        %v1185 = vor.u32 1.1754944e-38, %v1184
        %v1186 = vsel %vm1183, %v1185, %v1181
        %v1187 = vmul.f32 %v1115, %v1186
        %v1188 = vpack.c.bf16 %v1142, %v1142
        %v1189 = vpack.c.bf16 %v1157, %v1157
        %v1190 = vpack.c.bf16 %v1172, %v1172
        %v1191 = vpack.c.bf16 %v1187, %v1187
        %v1193 = vsel %vm1015, %v1188, 0
        %vm1195 = vcmask 1043456
        %v1197 = vsel %vm1195, %v1011, 0
        %1199 = vmatpush.bf16.msra.mxu0 0
        %1200 = vmatpush.bf16.msra.mxu0 0
        %1201 = vmatpush.bf16.msra.mxu0 0
        %1202 = vmatpush.bf16.msra.mxu0 0
        %1203 = vmatpush.bf16.msra.mxu0 0
        %1204 = vmatpush.bf16.msra.mxu0 0
        %1205 = vmatpush.bf16.msra.mxu0 0
        %1206 = vmatpush.bf16.msra.mxu0 %v1197
        %1207 = vmatmul.bf16.gmra.mxu0 %v1193
        %v1208 = vpop.f32.mrf.mxu0
        %v1209 = vadd.f32 0.0, %v1208
        %v1210 = vpop.f32.mrf.mxu0
        %1211 = vdwg.mxu0
        %v1213 = vsel %vm1015, %v1189, 0
        %v1216 = vsel %vm1195, %v1012, 0
        %1218 = vmatpush.bf16.msra.mxu0 0
        %1219 = vmatpush.bf16.msra.mxu0 0
        %1220 = vmatpush.bf16.msra.mxu0 0
        %1221 = vmatpush.bf16.msra.mxu0 0
        %1222 = vmatpush.bf16.msra.mxu0 0
        %1223 = vmatpush.bf16.msra.mxu0 0
        %1224 = vmatpush.bf16.msra.mxu0 0
        %1225 = vmatpush.bf16.msra.mxu0 %v1216
        %1226 = vmatmul.bf16.gmra.mxu0 %v1213
        %v1227 = vpop.f32.mrf.mxu0
        %v1228 = vadd.f32 0.0, %v1227
        %v1229 = vpop.f32.mrf.mxu0
        %1230 = vdwg.mxu0
        %v1232 = vsel %vm1015, %v1190, 0
        %v1235 = vsel %vm1195, %v1013, 0
        %1237 = vmatpush.bf16.msra.mxu0 0
        %1238 = vmatpush.bf16.msra.mxu0 0
        %1239 = vmatpush.bf16.msra.mxu0 0
        %1240 = vmatpush.bf16.msra.mxu0 0
        %1241 = vmatpush.bf16.msra.mxu0 0
        %1242 = vmatpush.bf16.msra.mxu0 0
        %1243 = vmatpush.bf16.msra.mxu0 0
        %1244 = vmatpush.bf16.msra.mxu0 %v1235
        %1245 = vmatmul.bf16.gmra.mxu0 %v1232
        %v1246 = vpop.f32.mrf.mxu0
        %v1247 = vadd.f32 0.0, %v1246
        %v1248 = vpop.f32.mrf.mxu0
        %1249 = vdwg.mxu0
        %v1251 = vsel %vm1015, %v1191, 0
        %v1254 = vsel %vm1195, %v1014, 0
        %1256 = vmatpush.bf16.msra.mxu0 0
        %1257 = vmatpush.bf16.msra.mxu0 0
        %1258 = vmatpush.bf16.msra.mxu0 0
        %1259 = vmatpush.bf16.msra.mxu0 0
        %1260 = vmatpush.bf16.msra.mxu0 0
        %1261 = vmatpush.bf16.msra.mxu0 0
        %1262 = vmatpush.bf16.msra.mxu0 0
        %1263 = vmatpush.bf16.msra.mxu0 %v1254
        %1264 = vmatmul.bf16.gmra.mxu0 %v1251
        %v1265 = vpop.f32.mrf.mxu0
        %v1266 = vadd.f32 0.0, %v1265
        %v1267 = vpop.f32.mrf.mxu0
        %1268 = vdwg.mxu0
        %v1269 = vrot.slane %v1247, 4
        %v1270 = vsel %vm649, %v1269, %v1209
        %v1271 = vrot.slane %v1209, 4
        %v1272 = vsel %vm649, %v1247, %v1271
        %v1274 = vunpack.c.l.s4 1983009808
        %v1275 = vunpack.c.0.s8 %v1274
        %v1276 = vperm.slane %v1270, %v1275
        %v1278 = vunpack.c.l.s4 1983009808
        %v1279 = vunpack.c.0.s8 %v1278
        %v1280 = vperm.slane %v1272, %v1279
        %v1281 = vrot.slane %v1266, 4
        %v1282 = vsel %vm649, %v1281, %v1228
        %v1283 = vrot.slane %v1228, 4
        %v1284 = vsel %vm649, %v1266, %v1283
        %v1286 = vunpack.c.l.s4 1983009808
        %v1287 = vunpack.c.0.s8 %v1286
        %v1288 = vperm.slane %v1282, %v1287
        %v1290 = vunpack.c.l.s4 1983009808
        %v1291 = vunpack.c.0.s8 %v1290
        %v1292 = vperm.slane %v1284, %v1291
        %v1293 = vrot.slane %v1288, 4
        %v1294 = vsel %vm649, %v1293, %v1276
        %v1295 = vrot.slane %v1276, 4
        %v1296 = vsel %vm649, %v1288, %v1295
        %v1298 = vunpack.c.l.s4 1934713408
        %v1299 = vunpack.c.0.s8 %v1298
        %v1300 = vperm.slane %v1294, %v1299
        %v1302 = vunpack.c.l.s4 1934713408
        %v1303 = vunpack.c.0.s8 %v1302
        %v1304 = vperm.slane %v1296, %v1303
        %v1305 = vrot.slane %v1292, 4
        %v1306 = vsel %vm649, %v1305, %v1280
        %v1307 = vrot.slane %v1280, 4
        %v1308 = vsel %vm649, %v1292, %v1307
        %v1310 = vunpack.c.l.s4 1934713408
        %v1311 = vunpack.c.0.s8 %v1310
        %v1312 = vperm.slane %v1306, %v1311
        %v1314 = vunpack.c.l.s4 1934713408
        %v1315 = vunpack.c.0.s8 %v1314
        %v1316 = vperm.slane %v1308, %v1315
        %v1317 = vrot.slane %v1300, 4
        %v1318 = vsel %vm649, 0.0, %v1317
        %v1319 = vrot.slane %v1304, 4
        %v1320 = vsel %vm649, 0.0, %v1319
        %v1321 = vrot.slane %v1312, 4
        %v1322 = vsel %vm649, 0.0, %v1321
        %v1323 = vrot.slane %v1316, 4
        %v1324 = vsel %vm649, 0.0, %v1323
        %v1325 = vsel %vm649, %v1319, %v1300
        %v1327 = vunpack.c.l.s4 1983009808
        %v1328 = vunpack.c.0.s8 %v1327
        %v1329 = vperm.slane %v1325, %v1328
        %v1330 = vrot.slane %v1320, 4
        %v1331 = vsel %vm649, %v1330, %v1318
        %v1333 = vunpack.c.l.s4 1983009808
        %v1334 = vunpack.c.0.s8 %v1333
        %v1335 = vperm.slane %v1331, %v1334
        %v1336 = vsel %vm649, %v1323, %v1312
        %v1338 = vunpack.c.l.s4 1983009808
        %v1339 = vunpack.c.0.s8 %v1338
        %v1340 = vperm.slane %v1336, %v1339
        %v1341 = vrot.slane %v1324, 4
        %v1342 = vsel %vm649, %v1341, %v1322
        %v1344 = vunpack.c.l.s4 1983009808
        %v1345 = vunpack.c.0.s8 %v1344
        %v1346 = vperm.slane %v1342, %v1345
        %v1347 = vrot.slane %v1335, 4
        %v1348 = vsel %vm649, %v1347, %v1329
        %v1349 = vrot.slane %v1329, 4
        %v1350 = vsel %vm649, %v1335, %v1349
        %v1352 = vunpack.c.l.s4 1934713408
        %v1353 = vunpack.c.0.s8 %v1352
        %v1354 = vperm.slane %v1348, %v1353
        %v1356 = vunpack.c.l.s4 1934713408
        %v1357 = vunpack.c.0.s8 %v1356
        %v1358 = vperm.slane %v1350, %v1357
        %v1359 = vrot.slane %v1346, 4
        %v1360 = vsel %vm649, %v1359, %v1340
        %v1361 = vrot.slane %v1340, 4
        %v1362 = vsel %vm649, %v1346, %v1361
        %v1364 = vunpack.c.l.s4 1934713408
        %v1365 = vunpack.c.0.s8 %v1364
        %v1366 = vperm.slane %v1360, %v1365
        %v1368 = vunpack.c.l.s4 1934713408
        %v1369 = vunpack.c.0.s8 %v1368
        %v1370 = vperm.slane %v1362, %v1369
        %v1371 = vrot.slane %v1366, 4
        %v1372 = vsel %vm649, %v1371, %v1354
        %v1373 = vrot.slane %v1354, 4
        %v1374 = vsel %vm649, %v1366, %v1373
        %v1375 = vrot.slane %v1370, 4
        %v1376 = vsel %vm649, %v1375, %v1358
        %v1377 = vrot.slane %v1358, 4
        %v1378 = vsel %vm649, %v1370, %v1377
        %1380 = vrot.lane.b32.xlu0 %v1374, 8
        %v1381 = vpop.permute.xlu0 %1380
        %1384 = vrot.lane.b32.xlu0 %v1376, 16
        %v1385 = vpop.permute.xlu0 %1384
        %1388 = vrot.lane.b32.xlu0 %v1378, 24
        %v1389 = vpop.permute.xlu0 %1388
        %v1391 = vsel %vm1015, %v1372, %v1381
        %vm1392 = vcmask 130048
        %v1393 = vsel %vm1392, %v1391, %v1385
        %vm1394 = vcmask 195584
        %v1395 = vsel %vm1394, %v1393, %v1389
        %1397 = vrot.lane.b32.xlu0 %v636, 120
        %v1398 = vpop.permute.xlu0 %1397
        %1400 = vrot.lane.b32.xlu0 %v636, 112
        %v1401 = vpop.permute.xlu0 %1400
        %1403 = vrot.lane.b32.xlu0 %v636, 104
        %v1404 = vpop.permute.xlu0 %1403
        %v1406 = vrot.slane %v1401, 4
        %v1407 = vsel %vm649, %v1406, %v636
        %v1408 = vrot.slane %v636, 4
        %v1409 = vsel %vm649, %v1401, %v1408
        %v1411 = vunpack.c.l.s4 1983009808
        %v1412 = vunpack.c.0.s8 %v1411
        %v1413 = vperm.slane %v1407, %v1412
        %v1415 = vunpack.c.l.s4 1983009808
        %v1416 = vunpack.c.0.s8 %v1415
        %v1417 = vperm.slane %v1409, %v1416
        %v1418 = vrot.slane %v1404, 4
        %v1419 = vsel %vm649, %v1418, %v1398
        %v1420 = vrot.slane %v1398, 4
        %v1421 = vsel %vm649, %v1404, %v1420
        %v1423 = vunpack.c.l.s4 1983009808
        %v1424 = vunpack.c.0.s8 %v1423
        %v1425 = vperm.slane %v1419, %v1424
        %v1427 = vunpack.c.l.s4 1983009808
        %v1428 = vunpack.c.0.s8 %v1427
        %v1429 = vperm.slane %v1421, %v1428
        %v1430 = vrot.slane %v1425, 4
        %v1431 = vsel %vm649, %v1430, %v1413
        %v1432 = vrot.slane %v1413, 4
        %v1433 = vsel %vm649, %v1425, %v1432
        %v1435 = vunpack.c.l.s4 1934713408
        %v1436 = vunpack.c.0.s8 %v1435
        %v1437 = vperm.slane %v1431, %v1436
        %v1439 = vunpack.c.l.s4 1934713408
        %v1440 = vunpack.c.0.s8 %v1439
        %v1441 = vperm.slane %v1433, %v1440
        %v1442 = vrot.slane %v1429, 4
        %v1443 = vsel %vm649, %v1442, %v1417
        %v1444 = vrot.slane %v1417, 4
        %v1445 = vsel %vm649, %v1429, %v1444
        %v1447 = vunpack.c.l.s4 1934713408
        %v1448 = vunpack.c.0.s8 %v1447
        %v1449 = vperm.slane %v1443, %v1448
        %v1451 = vunpack.c.l.s4 1934713408
        %v1452 = vunpack.c.0.s8 %v1451
        %v1453 = vperm.slane %v1445, %v1452
        %v1454 = vrot.slane %v1437, 4
        %v1455 = vsel %vm649, 0.0, %v1454
        %v1456 = vrot.slane %v1441, 4
        %v1457 = vsel %vm649, 0.0, %v1456
        %v1458 = vrot.slane %v1449, 4
        %v1459 = vsel %vm649, 0.0, %v1458
        %v1460 = vrot.slane %v1453, 4
        %v1461 = vsel %vm649, 0.0, %v1460
        %v1462 = vsel %vm649, %v1456, %v1437
        %v1464 = vunpack.c.l.s4 1983009808
        %v1465 = vunpack.c.0.s8 %v1464
        %v1466 = vperm.slane %v1462, %v1465
        %v1467 = vrot.slane %v1457, 4
        %v1468 = vsel %vm649, %v1467, %v1455
        %v1470 = vunpack.c.l.s4 1983009808
        %v1471 = vunpack.c.0.s8 %v1470
        %v1472 = vperm.slane %v1468, %v1471
        %v1473 = vsel %vm649, %v1460, %v1449
        %v1475 = vunpack.c.l.s4 1983009808
        %v1476 = vunpack.c.0.s8 %v1475
        %v1477 = vperm.slane %v1473, %v1476
        %v1478 = vrot.slane %v1461, 4
        %v1479 = vsel %vm649, %v1478, %v1459
        %v1481 = vunpack.c.l.s4 1983009808
        %v1482 = vunpack.c.0.s8 %v1481
        %v1483 = vperm.slane %v1479, %v1482
        %v1484 = vrot.slane %v1472, 4
        %v1485 = vsel %vm649, %v1484, %v1466
        %v1486 = vrot.slane %v1466, 4
        %v1487 = vsel %vm649, %v1472, %v1486
        %v1489 = vunpack.c.l.s4 1934713408
        %v1490 = vunpack.c.0.s8 %v1489
        %v1491 = vperm.slane %v1485, %v1490
        %v1493 = vunpack.c.l.s4 1934713408
        %v1494 = vunpack.c.0.s8 %v1493
        %v1495 = vperm.slane %v1487, %v1494
        %v1496 = vrot.slane %v1483, 4
        %v1497 = vsel %vm649, %v1496, %v1477
        %v1498 = vrot.slane %v1477, 4
        %v1499 = vsel %vm649, %v1483, %v1498
        %v1501 = vunpack.c.l.s4 1934713408
        %v1502 = vunpack.c.0.s8 %v1501
        %v1503 = vperm.slane %v1497, %v1502
        %v1505 = vunpack.c.l.s4 1934713408
        %v1506 = vunpack.c.0.s8 %v1505
        %v1507 = vperm.slane %v1499, %v1506
        %v1508 = vrot.slane %v1503, 4
        %v1509 = vsel %vm649, %v1508, %v1491
        %v1510 = vrot.slane %v1491, 4
        %v1511 = vsel %vm649, %v1503, %v1510
        %v1512 = vrot.slane %v1507, 4
        %v1513 = vsel %vm649, %v1512, %v1495
        %v1514 = vrot.slane %v1495, 4
        %v1515 = vsel %vm649, %v1507, %v1514
        %v1516 = vpack.c.bf16 %v1509, %v1509
        %v1517 = vpack.c.bf16 %v1511, %v1511
        %v1518 = vpack.c.bf16 %v1513, %v1513
        %v1519 = vpack.c.bf16 %v1515, %v1515
        %1520 = vrot.lane.b32.xlu0 %v636, 96
        %v1521 = vpop.permute.xlu0 %1520
        %1522 = vrot.lane.b32.xlu0 %v1398, 96
        %v1523 = vpop.permute.xlu0 %1522
        %1524 = vrot.lane.b32.xlu0 %v1401, 96
        %v1525 = vpop.permute.xlu0 %1524
        %1526 = vrot.lane.b32.xlu0 %v1404, 96
        %v1527 = vpop.permute.xlu0 %1526
        %v1532 = vrot.slane %v1525, 4
        %v1533 = vsel %vm649, %v1532, %v1521
        %v1534 = vrot.slane %v1521, 4
        %v1535 = vsel %vm649, %v1525, %v1534
        %v1537 = vunpack.c.l.s4 1983009808
        %v1538 = vunpack.c.0.s8 %v1537
        %v1539 = vperm.slane %v1533, %v1538
        %v1541 = vunpack.c.l.s4 1983009808
        %v1542 = vunpack.c.0.s8 %v1541
        %v1543 = vperm.slane %v1535, %v1542
        %v1544 = vrot.slane %v1527, 4
        %v1545 = vsel %vm649, %v1544, %v1523
        %v1546 = vrot.slane %v1523, 4
        %v1547 = vsel %vm649, %v1527, %v1546
        %v1549 = vunpack.c.l.s4 1983009808
        %v1550 = vunpack.c.0.s8 %v1549
        %v1551 = vperm.slane %v1545, %v1550
        %v1553 = vunpack.c.l.s4 1983009808
        %v1554 = vunpack.c.0.s8 %v1553
        %v1555 = vperm.slane %v1547, %v1554
        %v1556 = vrot.slane %v1551, 4
        %v1557 = vsel %vm649, %v1556, %v1539
        %v1558 = vrot.slane %v1539, 4
        %v1559 = vsel %vm649, %v1551, %v1558
        %v1561 = vunpack.c.l.s4 1934713408
        %v1562 = vunpack.c.0.s8 %v1561
        %v1563 = vperm.slane %v1557, %v1562
        %v1565 = vunpack.c.l.s4 1934713408
        %v1566 = vunpack.c.0.s8 %v1565
        %v1567 = vperm.slane %v1559, %v1566
        %v1568 = vrot.slane %v1555, 4
        %v1569 = vsel %vm649, %v1568, %v1543
        %v1570 = vrot.slane %v1543, 4
        %v1571 = vsel %vm649, %v1555, %v1570
        %v1573 = vunpack.c.l.s4 1934713408
        %v1574 = vunpack.c.0.s8 %v1573
        %v1575 = vperm.slane %v1569, %v1574
        %v1577 = vunpack.c.l.s4 1934713408
        %v1578 = vunpack.c.0.s8 %v1577
        %v1579 = vperm.slane %v1571, %v1578
        %v1580 = vrot.slane %v1563, 4
        %v1581 = vsel %vm649, 0.0, %v1580
        %v1582 = vrot.slane %v1567, 4
        %v1583 = vsel %vm649, 0.0, %v1582
        %v1584 = vrot.slane %v1575, 4
        %v1585 = vsel %vm649, 0.0, %v1584
        %v1586 = vrot.slane %v1579, 4
        %v1587 = vsel %vm649, 0.0, %v1586
        %v1588 = vsel %vm649, %v1582, %v1563
        %v1590 = vunpack.c.l.s4 1983009808
        %v1591 = vunpack.c.0.s8 %v1590
        %v1592 = vperm.slane %v1588, %v1591
        %v1593 = vrot.slane %v1583, 4
        %v1594 = vsel %vm649, %v1593, %v1581
        %v1596 = vunpack.c.l.s4 1983009808
        %v1597 = vunpack.c.0.s8 %v1596
        %v1598 = vperm.slane %v1594, %v1597
        %v1599 = vsel %vm649, %v1586, %v1575
        %v1601 = vunpack.c.l.s4 1983009808
        %v1602 = vunpack.c.0.s8 %v1601
        %v1603 = vperm.slane %v1599, %v1602
        %v1604 = vrot.slane %v1587, 4
        %v1605 = vsel %vm649, %v1604, %v1585
        %v1607 = vunpack.c.l.s4 1983009808
        %v1608 = vunpack.c.0.s8 %v1607
        %v1609 = vperm.slane %v1605, %v1608
        %v1610 = vrot.slane %v1598, 4
        %v1611 = vsel %vm649, %v1610, %v1592
        %v1612 = vrot.slane %v1592, 4
        %v1613 = vsel %vm649, %v1598, %v1612
        %v1615 = vunpack.c.l.s4 1934713408
        %v1616 = vunpack.c.0.s8 %v1615
        %v1617 = vperm.slane %v1611, %v1616
        %v1619 = vunpack.c.l.s4 1934713408
        %v1620 = vunpack.c.0.s8 %v1619
        %v1621 = vperm.slane %v1613, %v1620
        %v1622 = vrot.slane %v1609, 4
        %v1623 = vsel %vm649, %v1622, %v1603
        %v1624 = vrot.slane %v1603, 4
        %v1625 = vsel %vm649, %v1609, %v1624
        %v1627 = vunpack.c.l.s4 1934713408
        %v1628 = vunpack.c.0.s8 %v1627
        %v1629 = vperm.slane %v1623, %v1628
        %v1631 = vunpack.c.l.s4 1934713408
        %v1632 = vunpack.c.0.s8 %v1631
        %v1633 = vperm.slane %v1625, %v1632
        %v1634 = vrot.slane %v1629, 4
        %v1635 = vsel %vm649, %v1634, %v1617
        %v1636 = vrot.slane %v1617, 4
        %v1637 = vsel %vm649, %v1629, %v1636
        %v1638 = vrot.slane %v1633, 4
        %v1639 = vsel %vm649, %v1638, %v1621
        %v1640 = vrot.slane %v1621, 4
        %v1641 = vsel %vm649, %v1633, %v1640
        %v1642 = vpack.c.bf16 %v1635, %v1635
        %v1643 = vpack.c.bf16 %v1637, %v1637
        %v1644 = vpack.c.bf16 %v1639, %v1639
        %v1645 = vpack.c.bf16 %v1641, %v1641
        %1646 = vrot.lane.b32.xlu0 %v636, 64
        %v1647 = vpop.permute.xlu0 %1646
        %1648 = vrot.lane.b32.xlu0 %v1398, 64
        %v1649 = vpop.permute.xlu0 %1648
        %1650 = vrot.lane.b32.xlu0 %v1401, 64
        %v1651 = vpop.permute.xlu0 %1650
        %1652 = vrot.lane.b32.xlu0 %v1404, 64
        %v1653 = vpop.permute.xlu0 %1652
        %v1658 = vrot.slane %v1651, 4
        %v1659 = vsel %vm649, %v1658, %v1647
        %v1660 = vrot.slane %v1647, 4
        %v1661 = vsel %vm649, %v1651, %v1660
        %v1663 = vunpack.c.l.s4 1983009808
        %v1664 = vunpack.c.0.s8 %v1663
        %v1665 = vperm.slane %v1659, %v1664
        %v1667 = vunpack.c.l.s4 1983009808
        %v1668 = vunpack.c.0.s8 %v1667
        %v1669 = vperm.slane %v1661, %v1668
        %v1670 = vrot.slane %v1653, 4
        %v1671 = vsel %vm649, %v1670, %v1649
        %v1672 = vrot.slane %v1649, 4
        %v1673 = vsel %vm649, %v1653, %v1672
        %v1675 = vunpack.c.l.s4 1983009808
        %v1676 = vunpack.c.0.s8 %v1675
        %v1677 = vperm.slane %v1671, %v1676
        %v1679 = vunpack.c.l.s4 1983009808
        %v1680 = vunpack.c.0.s8 %v1679
        %v1681 = vperm.slane %v1673, %v1680
        %v1682 = vrot.slane %v1677, 4
        %v1683 = vsel %vm649, %v1682, %v1665
        %v1684 = vrot.slane %v1665, 4
        %v1685 = vsel %vm649, %v1677, %v1684
        %v1687 = vunpack.c.l.s4 1934713408
        %v1688 = vunpack.c.0.s8 %v1687
        %v1689 = vperm.slane %v1683, %v1688
        %v1691 = vunpack.c.l.s4 1934713408
        %v1692 = vunpack.c.0.s8 %v1691
        %v1693 = vperm.slane %v1685, %v1692
        %v1694 = vrot.slane %v1681, 4
        %v1695 = vsel %vm649, %v1694, %v1669
        %v1696 = vrot.slane %v1669, 4
        %v1697 = vsel %vm649, %v1681, %v1696
        %v1699 = vunpack.c.l.s4 1934713408
        %v1700 = vunpack.c.0.s8 %v1699
        %v1701 = vperm.slane %v1695, %v1700
        %v1703 = vunpack.c.l.s4 1934713408
        %v1704 = vunpack.c.0.s8 %v1703
        %v1705 = vperm.slane %v1697, %v1704
        %v1706 = vrot.slane %v1689, 4
        %v1707 = vsel %vm649, 0.0, %v1706
        %v1708 = vrot.slane %v1693, 4
        %v1709 = vsel %vm649, 0.0, %v1708
        %v1710 = vrot.slane %v1701, 4
        %v1711 = vsel %vm649, 0.0, %v1710
        %v1712 = vrot.slane %v1705, 4
        %v1713 = vsel %vm649, 0.0, %v1712
        %v1714 = vsel %vm649, %v1708, %v1689
        %v1716 = vunpack.c.l.s4 1983009808
        %v1717 = vunpack.c.0.s8 %v1716
        %v1718 = vperm.slane %v1714, %v1717
        %v1719 = vrot.slane %v1709, 4
        %v1720 = vsel %vm649, %v1719, %v1707
        %v1722 = vunpack.c.l.s4 1983009808
        %v1723 = vunpack.c.0.s8 %v1722
        %v1724 = vperm.slane %v1720, %v1723
        %v1725 = vsel %vm649, %v1712, %v1701
        %v1727 = vunpack.c.l.s4 1983009808
        %v1728 = vunpack.c.0.s8 %v1727
        %v1729 = vperm.slane %v1725, %v1728
        %v1730 = vrot.slane %v1713, 4
        %v1731 = vsel %vm649, %v1730, %v1711
        %v1733 = vunpack.c.l.s4 1983009808
        %v1734 = vunpack.c.0.s8 %v1733
        %v1735 = vperm.slane %v1731, %v1734
        %v1736 = vrot.slane %v1724, 4
        %v1737 = vsel %vm649, %v1736, %v1718
        %v1738 = vrot.slane %v1718, 4
        %v1739 = vsel %vm649, %v1724, %v1738
        %v1741 = vunpack.c.l.s4 1934713408
        %v1742 = vunpack.c.0.s8 %v1741
        %v1743 = vperm.slane %v1737, %v1742
        %v1745 = vunpack.c.l.s4 1934713408
        %v1746 = vunpack.c.0.s8 %v1745
        %v1747 = vperm.slane %v1739, %v1746
        %v1748 = vrot.slane %v1735, 4
        %v1749 = vsel %vm649, %v1748, %v1729
        %v1750 = vrot.slane %v1729, 4
        %v1751 = vsel %vm649, %v1735, %v1750
        %v1753 = vunpack.c.l.s4 1934713408
        %v1754 = vunpack.c.0.s8 %v1753
        %v1755 = vperm.slane %v1749, %v1754
        %v1757 = vunpack.c.l.s4 1934713408
        %v1758 = vunpack.c.0.s8 %v1757
        %v1759 = vperm.slane %v1751, %v1758
        %v1760 = vrot.slane %v1755, 4
        %v1761 = vsel %vm649, %v1760, %v1743
        %v1762 = vrot.slane %v1743, 4
        %v1763 = vsel %vm649, %v1755, %v1762
        %v1764 = vrot.slane %v1759, 4
        %v1765 = vsel %vm649, %v1764, %v1747
        %v1766 = vrot.slane %v1747, 4
        %v1767 = vsel %vm649, %v1759, %v1766
        %v1768 = vpack.c.bf16 %v1761, %v1761
        %v1769 = vpack.c.bf16 %v1763, %v1763
        %v1770 = vpack.c.bf16 %v1765, %v1765
        %v1771 = vpack.c.bf16 %v1767, %v1767
        %v1773 = vsel %vm1015, %v1516, 0
        %v1776 = vsel %vm1015, %v1642, 0
        %1778 = vmatpush.bf16.xpose.msra.mxu0 0
        %1779 = vmatpush.bf16.xpose.msra.mxu0 0
        %1780 = vmatpush.bf16.xpose.msra.mxu0 0
        %1781 = vmatpush.bf16.xpose.msra.mxu0 0
        %1782 = vmatpush.bf16.xpose.msra.mxu0 0
        %1783 = vmatpush.bf16.xpose.msra.mxu0 0
        %1784 = vmatpush.bf16.xpose.msra.mxu0 0
        %1785 = vmatpush.bf16.xpose.msra.mxu0 %v1776
        %1786 = vmatmul.bf16.gmra.mxu0 %v1773
        %v1787 = vpop.f32.mrf.mxu0
        %v1788 = vadd.f32 0.0, %v1787
        %v1789 = vpop.f32.mrf.mxu0
        %1790 = vdwg.mxu0
        %v1792 = vsel %vm1015, %v1517, 0
        %v1795 = vsel %vm1015, %v1643, 0
        %1797 = vmatpush.bf16.xpose.msra.mxu0 0
        %1798 = vmatpush.bf16.xpose.msra.mxu0 0
        %1799 = vmatpush.bf16.xpose.msra.mxu0 0
        %1800 = vmatpush.bf16.xpose.msra.mxu0 0
        %1801 = vmatpush.bf16.xpose.msra.mxu0 0
        %1802 = vmatpush.bf16.xpose.msra.mxu0 0
        %1803 = vmatpush.bf16.xpose.msra.mxu0 0
        %1804 = vmatpush.bf16.xpose.msra.mxu0 %v1795
        %1805 = vmatmul.bf16.gmra.mxu0 %v1792
        %v1806 = vpop.f32.mrf.mxu0
        %v1807 = vadd.f32 0.0, %v1806
        %v1808 = vpop.f32.mrf.mxu0
        %1809 = vdwg.mxu0
        %v1811 = vsel %vm1015, %v1518, 0
        %v1814 = vsel %vm1015, %v1644, 0
        %1816 = vmatpush.bf16.xpose.msra.mxu0 0
        %1817 = vmatpush.bf16.xpose.msra.mxu0 0
        %1818 = vmatpush.bf16.xpose.msra.mxu0 0
        %1819 = vmatpush.bf16.xpose.msra.mxu0 0
        %1820 = vmatpush.bf16.xpose.msra.mxu0 0
        %1821 = vmatpush.bf16.xpose.msra.mxu0 0
        %1822 = vmatpush.bf16.xpose.msra.mxu0 0
        %1823 = vmatpush.bf16.xpose.msra.mxu0 %v1814
        %1824 = vmatmul.bf16.gmra.mxu0 %v1811
        %v1825 = vpop.f32.mrf.mxu0
        %v1826 = vadd.f32 0.0, %v1825
        %v1827 = vpop.f32.mrf.mxu0
        %1828 = vdwg.mxu0
        %v1830 = vsel %vm1015, %v1519, 0
        %v1833 = vsel %vm1015, %v1645, 0
        %1835 = vmatpush.bf16.xpose.msra.mxu0 0
        %1836 = vmatpush.bf16.xpose.msra.mxu0 0
        %1837 = vmatpush.bf16.xpose.msra.mxu0 0
        %1838 = vmatpush.bf16.xpose.msra.mxu0 0
        %1839 = vmatpush.bf16.xpose.msra.mxu0 0
        %1840 = vmatpush.bf16.xpose.msra.mxu0 0
        %1841 = vmatpush.bf16.xpose.msra.mxu0 0
        %1842 = vmatpush.bf16.xpose.msra.mxu0 %v1833
        %1843 = vmatmul.bf16.gmra.mxu0 %v1830
        %v1844 = vpop.f32.mrf.mxu0
        %v1845 = vadd.f32 0.0, %v1844
        %v1846 = vpop.f32.mrf.mxu0
        %1847 = vdwg.mxu0
        %v1848 = vsel %vm1015, %v1788, -inf
        %1849 = vmax.xlane.f32.xlu0 %v1848
        %v1850 = vpop.xlane.xlu0 %1849
        %v1851 = vsel %vm1015, %v1807, -inf
        %1852 = vmax.xlane.f32.xlu0 %v1851
        %v1853 = vpop.xlane.xlu0 %1852
        %v1854 = vsel %vm1015, %v1826, -inf
        %1855 = vmax.xlane.f32.xlu0 %v1854
        %v1856 = vpop.xlane.xlu0 %1855
        %v1857 = vsel %vm1015, %v1845, -inf
        %1858 = vmax.xlane.f32.xlu0 %v1857
        %v1859 = vpop.xlane.xlu0 %1858
        %v1860 = vsub.f32 %v1788, %v1850
        %v1861 = vsub.f32 %v1807, %v1853
        %v1862 = vsub.f32 %v1826, %v1856
        %v1863 = vsub.f32 %v1845, %v1859
        %v1864 = vmul.f32 %v1860, 1.442695
        %v1865 = vpow.pop %v1864
        %v1866 = vmul.f32 %v1861, 1.442695
        %v1867 = vpow.pop %v1866
        %v1868 = vmul.f32 %v1862, 1.442695
        %v1869 = vpow.pop %v1868
        %v1870 = vmul.f32 %v1863, 1.442695
        %v1871 = vpow.pop %v1870
        %v1872 = vsel %vm1015, %v1865, 0.0
        %1873 = vadd.xlane.f32.xlu0 %v1872
        %v1874 = vpop.xlane.xlu0 %1873
        %v1875 = vsel %vm1015, %v1867, 0.0
        %1876 = vadd.xlane.f32.xlu0 %v1875
        %v1877 = vpop.xlane.xlu0 %1876
        %v1878 = vsel %vm1015, %v1869, 0.0
        %1879 = vadd.xlane.f32.xlu0 %v1878
        %v1880 = vpop.xlane.xlu0 %1879
        %v1881 = vsel %vm1015, %v1871, 0.0
        %1882 = vadd.xlane.f32.xlu0 %v1881
        %v1883 = vpop.xlane.xlu0 %1882
        %v1884 = vrcp.pop %v1874
        %v1885 = vmul.f32 %v1874, %v1884
        %v1886 = vsub.f32 1.0, %v1885
        %v1887 = vmul.f32 %v1884, %v1886
        %v1888 = vadd.f32 %v1884, %v1887
        %vm1889 = vweird.f32 %v1874
        %vm1890 = vweird.f32 %v1884
        %vm1891 = vmor %vm1889, %vm1890
        %v1892 = vsel %vm1891, %v1884, %v1888
        %v1893 = vand.u32 2147483647, %v1874
        %vm1894 = vcmp.eq.f32.partialorder %v1893, 8.507059e+37
        %v1895 = vand.u32 %v1874, 2147483648
        %v1896 = vor.u32 1.1754944e-38, %v1895
        %v1897 = vsel %vm1894, %v1896, %v1892
        %v1898 = vmul.f32 %v1865, %v1897
        %v1899 = vrcp.pop %v1877
        %v1900 = vmul.f32 %v1877, %v1899
        %v1901 = vsub.f32 1.0, %v1900
        %v1902 = vmul.f32 %v1899, %v1901
        %v1903 = vadd.f32 %v1899, %v1902
        %vm1904 = vweird.f32 %v1877
        %vm1905 = vweird.f32 %v1899
        %vm1906 = vmor %vm1904, %vm1905
        %v1907 = vsel %vm1906, %v1899, %v1903
        %v1908 = vand.u32 2147483647, %v1877
        %vm1909 = vcmp.eq.f32.partialorder %v1908, 8.507059e+37
        %v1910 = vand.u32 %v1877, 2147483648
        %v1911 = vor.u32 1.1754944e-38, %v1910
        %v1912 = vsel %vm1909, %v1911, %v1907
        %v1913 = vmul.f32 %v1867, %v1912
        %v1914 = vrcp.pop %v1880
        %v1915 = vmul.f32 %v1880, %v1914
        %v1916 = vsub.f32 1.0, %v1915
        %v1917 = vmul.f32 %v1914, %v1916
        %v1918 = vadd.f32 %v1914, %v1917
        %vm1919 = vweird.f32 %v1880
        %vm1920 = vweird.f32 %v1914
        %vm1921 = vmor %vm1919, %vm1920
        %v1922 = vsel %vm1921, %v1914, %v1918
        %v1923 = vand.u32 2147483647, %v1880
        %vm1924 = vcmp.eq.f32.partialorder %v1923, 8.507059e+37
        %v1925 = vand.u32 %v1880, 2147483648
        %v1926 = vor.u32 1.1754944e-38, %v1925
        %v1927 = vsel %vm1924, %v1926, %v1922
        %v1928 = vmul.f32 %v1869, %v1927
        %v1929 = vrcp.pop %v1883
        %v1930 = vmul.f32 %v1883, %v1929
        %v1931 = vsub.f32 1.0, %v1930
        %v1932 = vmul.f32 %v1929, %v1931
        %v1933 = vadd.f32 %v1929, %v1932
        %vm1934 = vweird.f32 %v1883
        %vm1935 = vweird.f32 %v1929
        %vm1936 = vmor %vm1934, %vm1935
        %v1937 = vsel %vm1936, %v1929, %v1933
        %v1938 = vand.u32 2147483647, %v1883
        %vm1939 = vcmp.eq.f32.partialorder %v1938, 8.507059e+37
        %v1940 = vand.u32 %v1883, 2147483648
        %v1941 = vor.u32 1.1754944e-38, %v1940
        %v1942 = vsel %vm1939, %v1941, %v1937
        %v1943 = vmul.f32 %v1871, %v1942
        %v1944 = vpack.c.bf16 %v1898, %v1898
        %v1945 = vpack.c.bf16 %v1913, %v1913
        %v1946 = vpack.c.bf16 %v1928, %v1928
        %v1947 = vpack.c.bf16 %v1943, %v1943
        %v1949 = vsel %vm1015, %v1944, 0
        %v1952 = vsel %vm1195, %v1768, 0
        %1954 = vmatpush.bf16.msra.mxu0 0
        %1955 = vmatpush.bf16.msra.mxu0 0
        %1956 = vmatpush.bf16.msra.mxu0 0
        %1957 = vmatpush.bf16.msra.mxu0 0
        %1958 = vmatpush.bf16.msra.mxu0 0
        %1959 = vmatpush.bf16.msra.mxu0 0
        %1960 = vmatpush.bf16.msra.mxu0 0
        %1961 = vmatpush.bf16.msra.mxu0 %v1952
        %1962 = vmatmul.bf16.gmra.mxu0 %v1949
        %v1963 = vpop.f32.mrf.mxu0
        %v1964 = vadd.f32 0.0, %v1963
        %v1965 = vpop.f32.mrf.mxu0
        %1966 = vdwg.mxu0
        %v1968 = vsel %vm1015, %v1945, 0
        %v1971 = vsel %vm1195, %v1769, 0
        %1973 = vmatpush.bf16.msra.mxu0 0
        %1974 = vmatpush.bf16.msra.mxu0 0
        %1975 = vmatpush.bf16.msra.mxu0 0
        %1976 = vmatpush.bf16.msra.mxu0 0
        %1977 = vmatpush.bf16.msra.mxu0 0
        %1978 = vmatpush.bf16.msra.mxu0 0
        %1979 = vmatpush.bf16.msra.mxu0 0
        %1980 = vmatpush.bf16.msra.mxu0 %v1971
        %1981 = vmatmul.bf16.gmra.mxu0 %v1968
        %v1982 = vpop.f32.mrf.mxu0
        %v1983 = vadd.f32 0.0, %v1982
        %v1984 = vpop.f32.mrf.mxu0
        %1985 = vdwg.mxu0
        %v1987 = vsel %vm1015, %v1946, 0
        %v1990 = vsel %vm1195, %v1770, 0
        %1992 = vmatpush.bf16.msra.mxu0 0
        %1993 = vmatpush.bf16.msra.mxu0 0
        %1994 = vmatpush.bf16.msra.mxu0 0
        %1995 = vmatpush.bf16.msra.mxu0 0
        %1996 = vmatpush.bf16.msra.mxu0 0
        %1997 = vmatpush.bf16.msra.mxu0 0
        %1998 = vmatpush.bf16.msra.mxu0 0
        %1999 = vmatpush.bf16.msra.mxu0 %v1990
        %2000 = vmatmul.bf16.gmra.mxu0 %v1987
        %v2001 = vpop.f32.mrf.mxu0
        %v2002 = vadd.f32 0.0, %v2001
        %v2003 = vpop.f32.mrf.mxu0
        %2004 = vdwg.mxu0
        %v2006 = vsel %vm1015, %v1947, 0
        %v2009 = vsel %vm1195, %v1771, 0
        %2011 = vmatpush.bf16.msra.mxu0 0
        %2012 = vmatpush.bf16.msra.mxu0 0
        %2013 = vmatpush.bf16.msra.mxu0 0
        %2014 = vmatpush.bf16.msra.mxu0 0
        %2015 = vmatpush.bf16.msra.mxu0 0
        %2016 = vmatpush.bf16.msra.mxu0 0
        %2017 = vmatpush.bf16.msra.mxu0 0
        %2018 = vmatpush.bf16.msra.mxu0 %v2009
        %2019 = vmatmul.bf16.gmra.mxu0 %v2006
        %v2020 = vpop.f32.mrf.mxu0
        %v2021 = vadd.f32 0.0, %v2020
        %v2022 = vpop.f32.mrf.mxu0
        %2023 = vdwg.mxu0
        %v2024 = vrot.slane %v2002, 4
        %v2025 = vsel %vm649, %v2024, %v1964
        %v2026 = vrot.slane %v1964, 4
        %v2027 = vsel %vm649, %v2002, %v2026
        %v2029 = vunpack.c.l.s4 1983009808
        %v2030 = vunpack.c.0.s8 %v2029
        %v2031 = vperm.slane %v2025, %v2030
        %v2033 = vunpack.c.l.s4 1983009808
        %v2034 = vunpack.c.0.s8 %v2033
        %v2035 = vperm.slane %v2027, %v2034
        %v2036 = vrot.slane %v2021, 4
        %v2037 = vsel %vm649, %v2036, %v1983
        %v2038 = vrot.slane %v1983, 4
        %v2039 = vsel %vm649, %v2021, %v2038
        %v2041 = vunpack.c.l.s4 1983009808
        %v2042 = vunpack.c.0.s8 %v2041
        %v2043 = vperm.slane %v2037, %v2042
        %v2045 = vunpack.c.l.s4 1983009808
        %v2046 = vunpack.c.0.s8 %v2045
        %v2047 = vperm.slane %v2039, %v2046
        %v2048 = vrot.slane %v2043, 4
        %v2049 = vsel %vm649, %v2048, %v2031
        %v2050 = vrot.slane %v2031, 4
        %v2051 = vsel %vm649, %v2043, %v2050
        %v2053 = vunpack.c.l.s4 1934713408
        %v2054 = vunpack.c.0.s8 %v2053
        %v2055 = vperm.slane %v2049, %v2054
        %v2057 = vunpack.c.l.s4 1934713408
        %v2058 = vunpack.c.0.s8 %v2057
        %v2059 = vperm.slane %v2051, %v2058
        %v2060 = vrot.slane %v2047, 4
        %v2061 = vsel %vm649, %v2060, %v2035
        %v2062 = vrot.slane %v2035, 4
        %v2063 = vsel %vm649, %v2047, %v2062
        %v2065 = vunpack.c.l.s4 1934713408
        %v2066 = vunpack.c.0.s8 %v2065
        %v2067 = vperm.slane %v2061, %v2066
        %v2069 = vunpack.c.l.s4 1934713408
        %v2070 = vunpack.c.0.s8 %v2069
        %v2071 = vperm.slane %v2063, %v2070
        %v2072 = vrot.slane %v2055, 4
        %v2073 = vsel %vm649, 0.0, %v2072
        %v2074 = vrot.slane %v2059, 4
        %v2075 = vsel %vm649, 0.0, %v2074
        %v2076 = vrot.slane %v2067, 4
        %v2077 = vsel %vm649, 0.0, %v2076
        %v2078 = vrot.slane %v2071, 4
        %v2079 = vsel %vm649, 0.0, %v2078
        %v2080 = vsel %vm649, %v2074, %v2055
        %v2082 = vunpack.c.l.s4 1983009808
        %v2083 = vunpack.c.0.s8 %v2082
        %v2084 = vperm.slane %v2080, %v2083
        %v2085 = vrot.slane %v2075, 4
        %v2086 = vsel %vm649, %v2085, %v2073
        %v2088 = vunpack.c.l.s4 1983009808
        %v2089 = vunpack.c.0.s8 %v2088
        %v2090 = vperm.slane %v2086, %v2089
        %v2091 = vsel %vm649, %v2078, %v2067
        %v2093 = vunpack.c.l.s4 1983009808
        %v2094 = vunpack.c.0.s8 %v2093
        %v2095 = vperm.slane %v2091, %v2094
        %v2096 = vrot.slane %v2079, 4
        %v2097 = vsel %vm649, %v2096, %v2077
        %v2099 = vunpack.c.l.s4 1983009808
        %v2100 = vunpack.c.0.s8 %v2099
        %v2101 = vperm.slane %v2097, %v2100
        %v2102 = vrot.slane %v2090, 4
        %v2103 = vsel %vm649, %v2102, %v2084
        %v2104 = vrot.slane %v2084, 4
        %v2105 = vsel %vm649, %v2090, %v2104
        %v2107 = vunpack.c.l.s4 1934713408
        %v2108 = vunpack.c.0.s8 %v2107
        %v2109 = vperm.slane %v2103, %v2108
        %v2111 = vunpack.c.l.s4 1934713408
        %v2112 = vunpack.c.0.s8 %v2111
        %v2113 = vperm.slane %v2105, %v2112
        %v2114 = vrot.slane %v2101, 4
        %v2115 = vsel %vm649, %v2114, %v2095
        %v2116 = vrot.slane %v2095, 4
        %v2117 = vsel %vm649, %v2101, %v2116
        %v2119 = vunpack.c.l.s4 1934713408
        %v2120 = vunpack.c.0.s8 %v2119
        %v2121 = vperm.slane %v2115, %v2120
        %v2123 = vunpack.c.l.s4 1934713408
        %v2124 = vunpack.c.0.s8 %v2123
        %v2125 = vperm.slane %v2117, %v2124
        %v2126 = vrot.slane %v2121, 4
        %v2127 = vsel %vm649, %v2126, %v2109
        %v2128 = vrot.slane %v2109, 4
        %v2129 = vsel %vm649, %v2121, %v2128
        %v2130 = vrot.slane %v2125, 4
        %v2131 = vsel %vm649, %v2130, %v2113
        %v2132 = vrot.slane %v2113, 4
        %v2133 = vsel %vm649, %v2125, %v2132
        %2135 = vrot.lane.b32.xlu0 %v2129, 8
        %v2136 = vpop.permute.xlu0 %2135
        %2139 = vrot.lane.b32.xlu0 %v2131, 16
        %v2140 = vpop.permute.xlu0 %2139
        %2143 = vrot.lane.b32.xlu0 %v2133, 24
        %v2144 = vpop.permute.xlu0 %2143
        %v2146 = vsel %vm1015, %v2127, %v2136
        %v2147 = vsel %vm1392, %v2146, %v2140
        %v2148 = vsel %vm1394, %v2147, %v2144
        %v2149 = vpack.c.bf16 %v2148, %v1395
        %v2150 = vld [vmem:[%s521] sm:$0xf]
        %v2151 = vld [vmem:[%s521 + $0x4] sm:$0xf]
        %v2152 = vld [vmem:[%s521 + $0x8] sm:$0xf]
        %v2153 = vld [vmem:[%s521 + $0xc] sm:$0xf]
        %v2154 = vperm.slane %v540, 2
        %v2159 = vunpack.c.l.b16 %v2150
        %v2160 = vunpack.c.l.b16 %v2151
        %v2161 = vunpack.c.l.b16 %v2152
        %v2162 = vunpack.c.l.b16 %v2153
        %v2163 = vpack.c.b16 %v2160, %v2159
        %v2164 = vpack.c.b16 %v2162, %v2161
        %v2168 = vsel %vm543, %v2149, 0
        %2170 = vmatpush.bf16.msra.mxu0 0
        %2171 = vmatpush.bf16.msra.mxu0 0
        %2172 = vmatpush.bf16.msra.mxu0 0
        %2173 = vmatpush.bf16.msra.mxu0 0
        %2174 = vmatpush.bf16.msra.mxu0 0
        %2175 = vmatpush.bf16.msra.mxu0 0
        %2176 = vmatpush.bf16.msra.mxu0 %v2164
        %2177 = vmatpush.bf16.msra.mxu0 %v2163
        %2178 = vmatmul.bf16.gmra.mxu0 %v2168
        %v2179 = vpop.f32.mrf.mxu0
        %v2180 = vadd.f32 %v2154, %v2179
        %v2181 = vpop.f32.mrf.mxu0
        %v2182 = vadd.f32 %v2154, %v2181
        %2183 = vdwg.mxu0
        %v2184 = vadd.f32 %v538, %v2180
        %v2185 = vadd.f32 %v539, %v2182
        %v2186 = vsel %vm543, %v2184, 0.0
        %2187 = vadd.xlane.f32.xlu0 %v2186
        %v2188 = vpop.xlane.xlu0 %2187
        %v2189 = vsel %vm543, %v2185, 0.0
        %2190 = vadd.xlane.f32.xlu0 %v2189
        %v2191 = vpop.xlane.xlu0 %2190
        %v2192 = vmul.f32 %v2188, %v556
        %v2193 = vmul.f32 %v2191, %v556
        %v2194 = vsub.f32 %v2184, %v2192
        %v2195 = vsub.f32 %v2185, %v2193
        %v2196 = vmul.f32 %v2194, %v2194
        %v2197 = vmul.f32 %v2195, %v2195
        %v2198 = vsel %vm543, %v2196, 0.0
        %2199 = vadd.xlane.f32.xlu0 %v2198
        %v2200 = vpop.xlane.xlu0 %2199
        %v2201 = vsel %vm543, %v2197, 0.0
        %2202 = vadd.xlane.f32.xlu0 %v2201
        %v2203 = vpop.xlane.xlu0 %2202
        %v2204 = vmul.f32 %v2200, %v556
        %v2205 = vmul.f32 %v2203, %v556
        %v2206 = vadd.f32 %v2204, 1e-06
        %v2207 = vadd.f32 %v2205, 1e-06
        %v2208 = vrsqrt.pop %v2206
        %v2209 = vmul.f32 %v2208, %v2206
        %v2210 = vmul.f32 %v2209, %v2208
        %v2211 = vmul.f32 0.5, %v2210
        %v2212 = vsub.f32 1.5, %v2211
        %v2213 = vmul.f32 %v2208, %v2212
        %vm2214 = vweird.f32 %v2206
        %vm2215 = vweird.f32 %v2208
        %vm2216 = vmor %vm2214, %vm2215
        %v2217 = vsel %vm2216, %v2208, %v2213
        %v2218 = vrsqrt.pop %v2207
        %v2219 = vmul.f32 %v2218, %v2207
        %v2220 = vmul.f32 %v2219, %v2218
        %v2221 = vmul.f32 0.5, %v2220
        %v2222 = vsub.f32 1.5, %v2221
        %v2223 = vmul.f32 %v2218, %v2222
        %vm2224 = vweird.f32 %v2207
        %vm2225 = vweird.f32 %v2218
        %vm2226 = vmor %vm2224, %vm2225
        %v2227 = vsel %vm2226, %v2218, %v2223
        %v2228 = vmul.f32 %v2194, %v2217
        %v2229 = vmul.f32 %v2195, %v2227
        %v2230 = vperm.slane %v540, 3
        %v2231 = vmul.f32 %v2228, %v2230
        %v2232 = vmul.f32 %v2229, %v2230
        %v2233 = vperm.slane %v540, 4
        %v2234 = vadd.f32 %v2231, %v2233
        %v2235 = vadd.f32 %v2232, %v2233
        %v2236 = vpack.c.bf16 %v2235, %v2234
        %v2237 = vld [vmem:[%s427] sm:$0xf]
        %v2238 = vld [vmem:[%s427 + $0x4] sm:$0xf]
        %v2239 = vld [vmem:[%s427 + $0x8] sm:$0xf]
        %v2240 = vld [vmem:[%s427 + $0xc] sm:$0xf]
        %v2242 = vperm.slane %v542, 0
        %v2248 = vunpack.c.l.b16 %v2237
        %v2249 = vunpack.c.l.b16 %v2238
        %v2250 = vunpack.c.l.b16 %v2239
        %v2251 = vunpack.c.l.b16 %v2240
        %v2252 = vpack.c.b16 %v2249, %v2248
        %v2253 = vpack.c.b16 %v2251, %v2250
        %v2257 = vsel %vm543, %v2236, 0
        %2259 = vmatpush.bf16.msra.mxu0 0
        %2260 = vmatpush.bf16.msra.mxu0 0
        %2261 = vmatpush.bf16.msra.mxu0 0
        %2262 = vmatpush.bf16.msra.mxu0 0
        %2263 = vmatpush.bf16.msra.mxu0 0
        %2264 = vmatpush.bf16.msra.mxu0 0
        %2265 = vmatpush.bf16.msra.mxu0 %v2253
        %2266 = vmatpush.bf16.msra.mxu0 %v2252
        %2267 = vmatmul.bf16.gmra.mxu0 %v2257
        %v2268 = vpop.f32.mrf.mxu0
        %v2269 = vadd.f32 %v2242, %v2268
        %v2270 = vpop.f32.mrf.mxu0
        %v2271 = vadd.f32 %v2242, %v2270
        %2272 = vdwg.mxu0
        %v2273 = vmul.f32 %v2269, 0.5
        %v2274 = vmul.f32 %v2271, 0.5
        %v2275 = vmul.f32 %v2269, 0.70710677
        %v2276 = vmul.f32 %v2271, 0.70710677
        %v2277 = vmul.f32 %v2275, %v2275
        %v2278 = vmin.f32 16.0, %v2277
        %v2279 = vmul.f32 %v2278, 2.1237322e-06
        %v2280 = vadd.f32 %v2279, 0.00028619796
        %v2281 = vmul.f32 %v2278, %v2280
        %v2282 = vadd.f32 %v2281, 0.0036580483
        %v2283 = vmul.f32 %v2278, %v2282
        %v2284 = vadd.f32 %v2283, 0.05243302
        %v2285 = vmul.f32 %v2278, %v2284
        %v2286 = vadd.f32 %v2285, 0.18741608
        %v2287 = vmul.f32 %v2278, %v2286
        %v2288 = vadd.f32 %v2287, 1.1283791
        %v2289 = vmul.f32 %v2275, %v2288
        %v2290 = vmul.f32 %v2278, 3.8918573e-05
        %v2291 = vadd.f32 %v2290, 0.001143296
        %v2292 = vmul.f32 %v2278, %v2291
        %v2293 = vadd.f32 %v2292, 0.014752088
        %v2294 = vmul.f32 %v2278, %v2293
        %v2295 = vadd.f32 %v2294, 0.112945676
        %v2296 = vmul.f32 %v2278, %v2295
        %v2297 = vadd.f32 %v2296, 0.4994258
        %v2298 = vmul.f32 %v2278, %v2297
        %v2299 = vadd.f32 %v2298, 1.0
        %v2300 = vrcp.pop %v2299
        %v2301 = vmul.f32 %v2299, %v2300
        %v2302 = vsub.f32 1.0, %v2301
        %v2303 = vmul.f32 %v2300, %v2302
        %v2304 = vadd.f32 %v2300, %v2303
        %vm2305 = vweird.f32 %v2299
        %vm2306 = vweird.f32 %v2300
        %vm2307 = vmor %vm2305, %vm2306
        %v2308 = vsel %vm2307, %v2300, %v2304
        %v2309 = vand.u32 2147483647, %v2299
        %vm2310 = vcmp.eq.f32.partialorder %v2309, 8.507059e+37
        %v2311 = vand.u32 %v2299, 2147483648
        %v2312 = vor.u32 1.1754944e-38, %v2311
        %v2313 = vsel %vm2310, %v2312, %v2308
        %v2314 = vmul.f32 %v2289, %v2313
        %v2315 = vmin.f32 %v2314, 1.0
        %v2316 = vmax.f32 %v2315, -1.0
        %v2317 = vmul.f32 %v2276, %v2276
        %v2318 = vmin.f32 16.0, %v2317
        %v2319 = vmul.f32 %v2318, 2.1237322e-06
        %v2320 = vadd.f32 %v2319, 0.00028619796
        %v2321 = vmul.f32 %v2318, %v2320
        %v2322 = vadd.f32 %v2321, 0.0036580483
        %v2323 = vmul.f32 %v2318, %v2322
        %v2324 = vadd.f32 %v2323, 0.05243302
        %v2325 = vmul.f32 %v2318, %v2324
        %v2326 = vadd.f32 %v2325, 0.18741608
        %v2327 = vmul.f32 %v2318, %v2326
        %v2328 = vadd.f32 %v2327, 1.1283791
        %v2329 = vmul.f32 %v2276, %v2328
        %v2330 = vmul.f32 %v2318, 3.8918573e-05
        %v2331 = vadd.f32 %v2330, 0.001143296
        %v2332 = vmul.f32 %v2318, %v2331
        %v2333 = vadd.f32 %v2332, 0.014752088
        %v2334 = vmul.f32 %v2318, %v2333
        %v2335 = vadd.f32 %v2334, 0.112945676
        %v2336 = vmul.f32 %v2318, %v2335
        %v2337 = vadd.f32 %v2336, 0.4994258
        %v2338 = vmul.f32 %v2318, %v2337
        %v2339 = vadd.f32 %v2338, 1.0
        %v2340 = vrcp.pop %v2339
        %v2341 = vmul.f32 %v2339, %v2340
        %v2342 = vsub.f32 1.0, %v2341
        %v2343 = vmul.f32 %v2340, %v2342
        %v2344 = vadd.f32 %v2340, %v2343
        %vm2345 = vweird.f32 %v2339
        %vm2346 = vweird.f32 %v2340
        %vm2347 = vmor %vm2345, %vm2346
        %v2348 = vsel %vm2347, %v2340, %v2344
        %v2349 = vand.u32 2147483647, %v2339
        %vm2350 = vcmp.eq.f32.partialorder %v2349, 8.507059e+37
        %v2351 = vand.u32 %v2339, 2147483648
        %v2352 = vor.u32 1.1754944e-38, %v2351
        %v2353 = vsel %vm2350, %v2352, %v2348
        %v2354 = vmul.f32 %v2329, %v2353
        %v2355 = vmin.f32 %v2354, 1.0
        %v2356 = vmax.f32 %v2355, -1.0
        %v2357 = vadd.f32 %v2316, 1.0
        %v2358 = vadd.f32 %v2356, 1.0
        %v2359 = vmul.f32 %v2273, %v2357
        %v2360 = vmul.f32 %v2274, %v2358
        %v2361 = vpack.c.bf16 %v2360, %v2359
        %v2362 = vld [vmem:[%s526] sm:$0xf]
        %v2363 = vld [vmem:[%s526 + $0x4] sm:$0xf]
        %v2364 = vld [vmem:[%s526 + $0x8] sm:$0xf]
        %v2365 = vld [vmem:[%s526 + $0xc] sm:$0xf]
        %v2366 = vld [vmem:[%s526 + $0x10] sm:$0xf]
        %v2367 = vld [vmem:[%s526 + $0x14] sm:$0xf]
        %v2368 = vld [vmem:[%s526 + $0x18] sm:$0xf]
        %v2369 = vld [vmem:[%s526 + $0x1c] sm:$0xf]
        %v2370 = vperm.slane %v540, 5
        %v2379 = vunpack.c.l.b16 %v2362
        %v2380 = vunpack.c.l.b16 %v2363
        %v2381 = vunpack.c.l.b16 %v2364
        %v2382 = vunpack.c.l.b16 %v2365
        %v2383 = vunpack.c.l.b16 %v2366
        %v2384 = vunpack.c.l.b16 %v2367
        %v2385 = vunpack.c.l.b16 %v2368
        %v2386 = vunpack.c.l.b16 %v2369
        %v2387 = vpack.c.b16 %v2380, %v2379
        %v2388 = vpack.c.b16 %v2382, %v2381
        %v2389 = vpack.c.b16 %v2384, %v2383
        %v2390 = vpack.c.b16 %v2386, %v2385
        %vm2395 = vcmask 523264
        %v2397 = vsel %vm2395, %v2361, 0
        %2399 = vmatpush.bf16.msra.mxu0 0
        %2400 = vmatpush.bf16.msra.mxu0 0
        %2401 = vmatpush.bf16.msra.mxu0 0
        %2402 = vmatpush.bf16.msra.mxu0 0
        %2403 = vmatpush.bf16.msra.mxu0 %v2390
        %2404 = vmatpush.bf16.msra.mxu0 %v2389
        %2405 = vmatpush.bf16.msra.mxu0 %v2388
        %2406 = vmatpush.bf16.msra.mxu0 %v2387
        %2407 = vmatmul.bf16.gmra.mxu0 %v2397
        %v2408 = vpop.f32.mrf.mxu0
        %v2409 = vadd.f32 %v2370, %v2408
        %v2410 = vpop.f32.mrf.mxu0
        %v2411 = vadd.f32 %v2370, %v2410
        %2412 = vdwg.mxu0
        %v2413 = vadd.f32 %v2184, %v2409
        %v2414 = vadd.f32 %v2185, %v2411
        %2415 = vst.msk [vmem:[#allocation2] sm:$0xff] %vm543, %v2413
        %2416 = vst.msk [vmem:[#allocation2 + $0x8] sm:$0xff] %vm543, %v2414
        %p2417 = scmp.eq.s32.totalorder %s34, 1
        // Predicated region
        $region73: #{tpu_custom_call.1} parent=55 // pred_check
          %p2418 = pneg %p2417
        $region74: #{tpu_custom_call.1} parent=55 // pred_check_branch
          %2420 = sbr.rel (%p2418) target = $region76
        $region75: #{tpu_custom_call.1} parent=55 // pred_region
          %v2421 = vld [vmem:[#allocation8] sm:$0x3]
          %v2422 = vsel %vm543, %v2413, 0.0
          %2423 = vadd.xlane.f32.xlu0 %v2422
          %v2424 = vpop.xlane.xlu0 %2423
          %v2425 = vsel %vm543, %v2414, 0.0
          %2426 = vadd.xlane.f32.xlu0 %v2425
          %v2427 = vpop.xlane.xlu0 %2426
          %v2428 = vmul.f32 %v2424, %v556
          %v2429 = vmul.f32 %v2427, %v556
          %v2430 = vsub.f32 %v2413, %v2428
          %v2431 = vsub.f32 %v2414, %v2429
          %v2432 = vmul.f32 %v2430, %v2430
          %v2433 = vmul.f32 %v2431, %v2431
          %v2434 = vsel %vm543, %v2432, 0.0
          %2435 = vadd.xlane.f32.xlu0 %v2434
          %v2436 = vpop.xlane.xlu0 %2435
          %v2437 = vsel %vm543, %v2433, 0.0
          %2438 = vadd.xlane.f32.xlu0 %v2437
          %v2439 = vpop.xlane.xlu0 %2438
          %v2440 = vmul.f32 %v2436, %v556
          %v2441 = vmul.f32 %v2439, %v556
          %v2442 = vadd.f32 %v2440, 1e-06
          %v2443 = vadd.f32 %v2441, 1e-06
          %v2444 = vrsqrt.pop %v2442
          %v2445 = vmul.f32 %v2444, %v2442
          %v2446 = vmul.f32 %v2445, %v2444
          %v2447 = vmul.f32 0.5, %v2446
          %v2448 = vsub.f32 1.5, %v2447
          %v2449 = vmul.f32 %v2444, %v2448
          %vm2450 = vweird.f32 %v2442
          %vm2451 = vweird.f32 %v2444
          %vm2452 = vmor %vm2450, %vm2451
          %v2453 = vsel %vm2452, %v2444, %v2449
          %v2454 = vrsqrt.pop %v2443
          %v2455 = vmul.f32 %v2454, %v2443
          %v2456 = vmul.f32 %v2455, %v2454
          %v2457 = vmul.f32 0.5, %v2456
          %v2458 = vsub.f32 1.5, %v2457
          %v2459 = vmul.f32 %v2454, %v2458
          %vm2460 = vweird.f32 %v2443
          %vm2461 = vweird.f32 %v2454
          %vm2462 = vmor %vm2460, %vm2461
          %v2463 = vsel %vm2462, %v2454, %v2459
          %v2464 = vmul.f32 %v2430, %v2453
          %v2465 = vmul.f32 %v2431, %v2463
          %v2466 = vperm.slane %v2421, 0
          %v2467 = vmul.f32 %v2464, %v2466
          %v2468 = vmul.f32 %v2465, %v2466
          %v2469 = vperm.slane %v2421, 1
          %v2470 = vadd.f32 %v2467, %v2469
          %v2471 = vadd.f32 %v2468, %v2469
          %2472 = vst.msk [vmem:[%s498] sm:$0xff] %vm543, %v2470
          %2473 = vst.msk [vmem:[%s498 + $0x8] sm:$0xff] %vm543, %v2471
        $region76: #{tpu_custom_call.1} parent=55 // pred_fallthru
          _
        %s2474 = sand.u32 %s278, 1
        %s2475 = scalar_lea.sflag [#allocation5], %s2474
        %s2476 = sand.u32 %s278, 1
        %s2477 = smul.addr %s2476, 16
        %s2478 = scalar_lea.vmem [#allocation9], %s2477
        // Predicated region
        $region77: #{tpu_custom_call.1} parent=55 // pred_check
          %p2479 = pneg %p288
        $region78: #{tpu_custom_call.1} parent=55 // pred_check_branch
          %2481 = sbr.rel (%p2479) target = $region80
        $region79: #{tpu_custom_call.1} parent=55 // pred_region
          %s2482 = smul.u32 2, %s33
          %2484 = vsyncadd %s2475, 0
          %s2485 = smul.addr %s2482, 8
          %s2486 = scalar_lea.hbm %s9, %s2485
          %s2487 = sshll.u32 %s2478, 4
          %s2488 = int_to_ptr.vmem [resolvable:$true] %s2487
          %s2489 = sshll.u32 %s2486, 4
          %s2490 = int_to_ptr.hbm [resolvable:$true] %s2489
          %2495 = dma.vmem_to_hbm [thread:$0]  %s2488, 256, %s2490, %s2475, 128, 128, 8
        $region80: #{tpu_custom_call.1} parent=55 // pred_fallthru
          _
      $region56: #{tpu_custom_call.1} parent=5 // pred_fallthru
        _
      %p2496 = scmp.le.s32.totalorder 2, %s24
      // Predicated region
      $region81: #{tpu_custom_call.1} parent=5 // pred_check
        %p2497 = pneg %p2496
      $region82: #{tpu_custom_call.1} parent=5 // pred_check_branch
        %2499 = sbr.rel (%p2497) target = $region84
      $region83: #{tpu_custom_call.1} parent=5 // pred_region
        %s2500 = ssub.s32 %s24, 2
        // Predicated region
        $region85: #{tpu_custom_call.1} parent=83 // pred_check
          %p2501 = pneg %p294
        $region86: #{tpu_custom_call.1} parent=83 // pred_check_branch
          %2503 = sbr.rel (%p2501) target = $region88
        $region87: #{tpu_custom_call.1} parent=83 // pred_region
          %s2504 = sand.u32 %s279, 1
          %s2505 = scalar_lea.sflag [#allocation5], %s2504
          %s2506 = sand.u32 %s279, 1
          %s2507 = smul.addr %s2506, 16
          %s2508 = scalar_lea.vmem [#allocation9], %s2507
          %2510 = dma.done %s2505, 256
        $region88: #{tpu_custom_call.1} parent=83 // pred_fallthru
          _
      $region84: #{tpu_custom_call.1} parent=5 // pred_fallthru
        _
    $region6: #{tpu_custom_call.1} parent=1 // loop_footer
      %s28 = sadd.s32 1, %s24
    $region7: #{tpu_custom_call.1} parent=1 // loop_footer_branch
      %23 = sbr.rel target = $region3
    $region8: #{tpu_custom_call.1} parent=1 // loop_exit
      _
    %2511 = vsyncpa [#allocation4], 1
    %s2512 = scalar_lea.sflag [#allocation4], 1
    %2513 = vsyncpa %s2512, 1
    %2514 = vsyncpa [#allocation7], 1
    %s2515 = scalar_lea.sflag [#allocation7], 1
    %2516 = vsyncpa %s2515, 1
    %2517 = vsyncpa [#allocation5], 1
    %s2518 = scalar_lea.sflag [#allocation5], 1
    %2519 = vsyncpa %s2518, 1

</llo_original>
